<compile_context>
chip_gen: v7x
topology: tpu7x:2x2x1
jax: 0.10.0
libtpu: 0.0.40
codegen_flags: <defaults>
</compile_context>

<pallas_src>
import functools

import jax
import jax.numpy as jnp
from jax.experimental import pallas as pl
from jax.experimental.pallas import tpu as pltpu


NUM_TRANSFORMS = 8  # hflip x vflip x rot90  (2 * 2 * 2)


# ---------------------------------------------------------------------------
# Kernel: 3x3 SAME conv of g images; taps gathered in-kernel by lane slicing
# ---------------------------------------------------------------------------

def _conv3x3_kernel(x_ref, w_ref, b_ref, o_ref, *, tap_starts):
    # x_ref: (g, C, Lp)      per-image zero-padded canvas, flattened over
    #                        (H+2, W+2) and lane-padded by W+3 on both sides
    # w_ref: (9, Co_pad, C)  ensemble-averaged weight, one (Co_pad, C) per tap
    # b_ref: (Co_pad, 1)     bias (Co zero-padded to 8 sublanes)
    # o_ref: (g, Co_pad, hw) full padded output canvas per image
    g = x_ref.shape[0]
    hw = o_ref.shape[-1]
    bias = b_ref[...]
    for j in range(g):
        x = x_ref[j]                                    # (C, Lp), resident in VMEM
        acc = None
        for t, start in enumerate(tap_starts):
            xt = x[:, start:start + hw]                 # static lane-offset slice
            d = jnp.dot(w_ref[t], xt, preferred_element_type=jnp.float32)
            acc = d if acc is None else acc + d
        o_ref[j] = (acc + bias).astype(o_ref.dtype)


# ---------------------------------------------------------------------------
# Glue: dihedral weight transforms (ensemble collapse) + layout plumbing
# ---------------------------------------------------------------------------

def _transform_weight(w, hflip, vflip, rotate):
    # Effective kernel w' such that conv_{w'}(x) == T^-1(conv_w(T(x))) for the
    # dihedral transform T applied in SelfEnsembleModel's order (valid for a
    # linear conv with symmetric SAME zero padding; verified in __main__).
    if rotate:
        w = jnp.rot90(w, k=3, axes=(-2, -1))
    if vflip:
        w = jnp.flip(w, axis=-1)
    if hflip:
        w = jnp.flip(w, axis=-2)
    return w


def _images_per_block(n, hw):
    # Pack several small images into one grid step (bigger DMAs, fewer ~0.35us
    # grid steps), but keep >= 2 grid steps when possible so the "parallel"
    # axis can feed both TensorCores, and keep the unrolled in-kernel loop short.
    g = 1
    for cand in range(1, min(n, 8) + 1):
        if n % cand == 0 and cand * hw <= 32768 and n // cand >= min(n, 2):
            g = cand
    return g


@jax.jit
def self_ensemble_forward(x, weight, bias):
    """Mean over the 8 dihedral self-ensemble branches of Conv2d(C,C,3,pad=1).

    x: (N, C, H, W); weight: (Co, C, 3, 3); bias: (Co,) -> (N, Co, H, W)
    """
    # TODO(synk): median=True branch (torch.quantile over dim 0) not implemented;
    #             only the default mean branch is reproduced.
    # TODO(synk): the weight-averaging collapse relies on the wrapped model being
    #             linear; a nonlinear model needs the 8 activation branches.
    N, C, H, W = x.shape
    Co, Ci, KH, KW = weight.shape
    assert Ci == C and KH == 3 and KW == 3

    Hp, Wp = H + 2, W + 2
    hw = Hp * Wp                       # padded canvas size per image (lane axis)
    halo = W + 3                       # max |tap shift| along the flat canvas
    Lp = hw + 2 * halo
    Co_pad = ((Co + 7) // 8) * 8       # full-sublane (unmasked) output stores

    # --- activations: spatial zero-pad + flatten, lane-dense over the canvas.
    xpad = jnp.pad(x.astype(jnp.float32), ((0, 0), (0, 0), (1, 1), (1, 1)))
    x_lanes = jnp.pad(xpad.reshape(N, C, hw), ((0, 0), (0, 0), (halo, halo)))

    # --- ensemble collapse: average the 8 transformed weights (exact for mean;
    #     the per-branch bias also averages back to `bias`).
    w_mean = sum(
        _transform_weight(weight.astype(jnp.float32), hf, vf, rot)
        for hf in (False, True) for vf in (False, True) for rot in (False, True)
    ) * (1.0 / NUM_TRANSFORMS)                                    # (Co, C, 3, 3)
    w_taps = jnp.transpose(w_mean, (2, 3, 0, 1)).reshape(9, Co, C)
    w_taps = jnp.pad(w_taps, ((0, 0), (0, Co_pad - Co), (0, 0)))  # (9, Co_pad, C)
    bias_p = jnp.pad(bias.astype(jnp.float32), (0, Co_pad - Co)).reshape(Co_pad, 1)

    # Tap t = ky*3 + kx reads canvas position o + (ky-1)*Wp + (kx-1); with the
    # `halo` lane pad that is the in-kernel slice [ky*Wp + kx : ky*Wp + kx + hw].
    tap_starts = tuple(ky * Wp + kx for ky in range(3) for kx in range(3))

    g = _images_per_block(N, hw)
    grid = (N // g,)

    in_block = g * C * Lp * 4
    out_block = g * Co_pad * hw * 4
    vmem_limit = int(min(max(4 * (in_block + out_block) + (8 << 20), 16 << 20),
                         32 << 20))   # safe on v5e/v6e (128 MiB) and v7x (64 MiB)

    out_canvas = pl.pallas_call(
        functools.partial(_conv3x3_kernel, tap_starts=tap_starts),
        out_shape=jax.ShapeDtypeStruct((N, Co_pad, hw), jnp.float32),
        grid=grid,
        in_specs=[
            pl.BlockSpec((g, C, Lp), lambda i: (i, 0, 0)),
            pl.BlockSpec((9, Co_pad, C), lambda i: (0, 0, 0)),   # tiny, resident
            pl.BlockSpec((Co_pad, 1), lambda i: (0, 0)),
        ],
        out_specs=pl.BlockSpec((g, Co_pad, hw), lambda i: (i, 0, 0)),
        compiler_params=pltpu.CompilerParams(
            dimension_semantics=("parallel",),
            vmem_limit_bytes=vmem_limit),
    )(x_lanes, w_taps, bias_p)

    # Interior of the padded canvas, channel pad removed: already in
    # (N, Co, H, W) order (single XLA slice, no transpose pass).
    return out_canvas.reshape(N, Co_pad, Hp, Wp)[:, :Co, 1:1 + H, 1:1 + W]


# ---------------------------------------------------------------------------
# Main
# ---------------------------------------------------------------------------

if __name__ == "__main__":
    key = jax.random.PRNGKey(0)
    k_x, k_w, k_b = jax.random.split(key, 3)

    N, C, H, W = 2, 4, 16, 16
    x = jax.random.normal(k_x, (N, C, H, W), dtype=jnp.float32)

    # Deterministic "model" parameters: Conv2d(C, C, 3, padding=1)
    weight = 0.1 * jax.random.normal(k_w, (C, C, 3, 3), dtype=jnp.float32)
    bias = 0.1 * jax.random.normal(k_b, (C,), dtype=jnp.float32)

    out = jax.block_until_ready(self_ensemble_forward(x, weight, bias))

    # Faithful reference: literal activation flips / rot90 around a lax conv,
    # exactly mirroring SelfEnsembleModel.forward (median=False).
    def ref_conv(xx):
        y = jax.lax.conv_general_dilated(
            xx, weight, window_strides=(1, 1), padding="SAME",
            dimension_numbers=("NCHW", "OIHW", "NCHW"))
        return y + bias.reshape(1, C, 1, 1)

    def ref_transformed(xx, hf, vf, rot):
        if hf:
            xx = jnp.flip(xx, axis=-2)
        if vf:
            xx = jnp.flip(xx, axis=-1)
        if rot:
            xx = jnp.rot90(xx, k=1, axes=(-2, -1))
        xx = ref_conv(xx)
        if rot:
            xx = jnp.rot90(xx, k=3, axes=(-2, -1))
        if vf:
            xx = jnp.flip(xx, axis=-1)
        if hf:
            xx = jnp.flip(xx, axis=-2)
        return xx

    ref = jnp.mean(
        jnp.stack([ref_transformed(x, hf, vf, r)
                   for hf in (False, True)
                   for vf in (False, True)
                   for r in (False, True)]),
        axis=0)

    assert out.shape == (N, C, H, W)
    assert jnp.max(jnp.abs(out - ref)) < 1e-4

    print("KERNEL_OK")
</pallas_src>

<mosaic_0001>
module attributes {stable_mosaic.version = 11 : i64} {
  func.func @_conv3x3_kernel(%arg0: i32, %arg1: memref<1x4x362xf32, #tpu.memory_space<vmem>>, %arg2: memref<9x8x4xf32, #tpu.memory_space<vmem>>, %arg3: memref<8x1xf32, #tpu.memory_space<vmem>>, %arg4: memref<1x8x324xf32, #tpu.memory_space<vmem>>) attributes {dimension_semantics = [#tpu.dimension_semantics<parallel>], iteration_bounds = array<i64: 2>, scalar_prefetch = 0 : i64, scratch_operands = 0 : i64, tpu.core_type = #tpu.core_type<tc>, window_params = [{transform_indices = @transform_0, window_bounds = array<i64: 1, 4, 362>}, {pipeline_mode = #tpu.pipeline_mode<synchronous>, transform_indices = @transform_1, window_bounds = array<i64: 9, 8, 4>}, {pipeline_mode = #tpu.pipeline_mode<synchronous>, transform_indices = @transform_2, window_bounds = array<i64: 8, 1>}, {transform_indices = @transform_3, window_bounds = array<i64: 1, 8, 324>}]} {
    %c0 = arith.constant 0 : index
    %c0_0 = arith.constant 0 : index
    %0 = vector.load %arg3[%c0, %c0_0] : memref<8x1xf32, #tpu.memory_space<vmem>>, vector<8x1xf32>
    %c0_1 = arith.constant 0 : index
    %c0_2 = arith.constant 0 : index
    %c0_3 = arith.constant 0 : index
    %1 = vector.load %arg1[%c0_1, %c0_2, %c0_3] : memref<1x4x362xf32, #tpu.memory_space<vmem>>, vector<1x4x362xf32>
    %2 = vector.shape_cast %1 : vector<1x4x362xf32> to vector<4x362xf32>
    %3 = vector.extract_strided_slice %2 {offsets = [0, 0], sizes = [4, 324], strides = [1, 1]} : vector<4x362xf32> to vector<4x324xf32>
    %c0_4 = arith.constant 0 : index
    %c0_5 = arith.constant 0 : index
    %c0_6 = arith.constant 0 : index
    %4 = vector.load %arg2[%c0_4, %c0_5, %c0_6] : memref<9x8x4xf32, #tpu.memory_space<vmem>>, vector<1x8x4xf32>
    %5 = vector.shape_cast %4 : vector<1x8x4xf32> to vector<8x4xf32>
    %cst = arith.constant dense<0.000000e+00> : vector<8x324xf32>
    %6 = tpu.matmul %5, %3, %cst {dimension_numbers = #tpu.dot_dimension_numbers<[1], [0], [0], [1], [0, 0, 1, 1], [], []>} : vector<8x4xf32>, vector<4x324xf32>, vector<8x324xf32> -> vector<8x324xf32>
    %7 = vector.extract_strided_slice %2 {offsets = [0, 1], sizes = [4, 324], strides = [1, 1]} : vector<4x362xf32> to vector<4x324xf32>
    %c1 = arith.constant 1 : index
    %c0_7 = arith.constant 0 : index
    %c0_8 = arith.constant 0 : index
    %8 = vector.load %arg2[%c1, %c0_7, %c0_8] : memref<9x8x4xf32, #tpu.memory_space<vmem>>, vector<1x8x4xf32>
    %9 = vector.shape_cast %8 : vector<1x8x4xf32> to vector<8x4xf32>
    %cst_9 = arith.constant dense<0.000000e+00> : vector<8x324xf32>
    %10 = tpu.matmul %9, %7, %cst_9 {dimension_numbers = #tpu.dot_dimension_numbers<[1], [0], [0], [1], [0, 0, 1, 1], [], []>} : vector<8x4xf32>, vector<4x324xf32>, vector<8x324xf32> -> vector<8x324xf32>
    %11 = arith.addf %6, %10 : vector<8x324xf32>
    %12 = vector.extract_strided_slice %2 {offsets = [0, 2], sizes = [4, 324], strides = [1, 1]} : vector<4x362xf32> to vector<4x324xf32>
    %c2 = arith.constant 2 : index
    %c0_10 = arith.constant 0 : index
    %c0_11 = arith.constant 0 : index
    %13 = vector.load %arg2[%c2, %c0_10, %c0_11] : memref<9x8x4xf32, #tpu.memory_space<vmem>>, vector<1x8x4xf32>
    %14 = vector.shape_cast %13 : vector<1x8x4xf32> to vector<8x4xf32>
    %cst_12 = arith.constant dense<0.000000e+00> : vector<8x324xf32>
    %15 = tpu.matmul %14, %12, %cst_12 {dimension_numbers = #tpu.dot_dimension_numbers<[1], [0], [0], [1], [0, 0, 1, 1], [], []>} : vector<8x4xf32>, vector<4x324xf32>, vector<8x324xf32> -> vector<8x324xf32>
    %16 = arith.addf %11, %15 : vector<8x324xf32>
    %17 = vector.extract_strided_slice %2 {offsets = [0, 18], sizes = [4, 324], strides = [1, 1]} : vector<4x362xf32> to vector<4x324xf32>
    %c3 = arith.constant 3 : index
    %c0_13 = arith.constant 0 : index
    %c0_14 = arith.constant 0 : index
    %18 = vector.load %arg2[%c3, %c0_13, %c0_14] : memref<9x8x4xf32, #tpu.memory_space<vmem>>, vector<1x8x4xf32>
    %19 = vector.shape_cast %18 : vector<1x8x4xf32> to vector<8x4xf32>
    %cst_15 = arith.constant dense<0.000000e+00> : vector<8x324xf32>
    %20 = tpu.matmul %19, %17, %cst_15 {dimension_numbers = #tpu.dot_dimension_numbers<[1], [0], [0], [1], [0, 0, 1, 1], [], []>} : vector<8x4xf32>, vector<4x324xf32>, vector<8x324xf32> -> vector<8x324xf32>
    %21 = arith.addf %16, %20 : vector<8x324xf32>
    %22 = vector.extract_strided_slice %2 {offsets = [0, 19], sizes = [4, 324], strides = [1, 1]} : vector<4x362xf32> to vector<4x324xf32>
    %c4 = arith.constant 4 : index
    %c0_16 = arith.constant 0 : index
    %c0_17 = arith.constant 0 : index
    %23 = vector.load %arg2[%c4, %c0_16, %c0_17] : memref<9x8x4xf32, #tpu.memory_space<vmem>>, vector<1x8x4xf32>
    %24 = vector.shape_cast %23 : vector<1x8x4xf32> to vector<8x4xf32>
    %cst_18 = arith.constant dense<0.000000e+00> : vector<8x324xf32>
    %25 = tpu.matmul %24, %22, %cst_18 {dimension_numbers = #tpu.dot_dimension_numbers<[1], [0], [0], [1], [0, 0, 1, 1], [], []>} : vector<8x4xf32>, vector<4x324xf32>, vector<8x324xf32> -> vector<8x324xf32>
    %26 = arith.addf %21, %25 : vector<8x324xf32>
    %27 = vector.extract_strided_slice %2 {offsets = [0, 20], sizes = [4, 324], strides = [1, 1]} : vector<4x362xf32> to vector<4x324xf32>
    %c5 = arith.constant 5 : index
    %c0_19 = arith.constant 0 : index
    %c0_20 = arith.constant 0 : index
    %28 = vector.load %arg2[%c5, %c0_19, %c0_20] : memref<9x8x4xf32, #tpu.memory_space<vmem>>, vector<1x8x4xf32>
    %29 = vector.shape_cast %28 : vector<1x8x4xf32> to vector<8x4xf32>
    %cst_21 = arith.constant dense<0.000000e+00> : vector<8x324xf32>
    %30 = tpu.matmul %29, %27, %cst_21 {dimension_numbers = #tpu.dot_dimension_numbers<[1], [0], [0], [1], [0, 0, 1, 1], [], []>} : vector<8x4xf32>, vector<4x324xf32>, vector<8x324xf32> -> vector<8x324xf32>
    %31 = arith.addf %26, %30 : vector<8x324xf32>
    %32 = vector.extract_strided_slice %2 {offsets = [0, 36], sizes = [4, 324], strides = [1, 1]} : vector<4x362xf32> to vector<4x324xf32>
    %c6 = arith.constant 6 : index
    %c0_22 = arith.constant 0 : index
    %c0_23 = arith.constant 0 : index
    %33 = vector.load %arg2[%c6, %c0_22, %c0_23] : memref<9x8x4xf32, #tpu.memory_space<vmem>>, vector<1x8x4xf32>
    %34 = vector.shape_cast %33 : vector<1x8x4xf32> to vector<8x4xf32>
    %cst_24 = arith.constant dense<0.000000e+00> : vector<8x324xf32>
    %35 = tpu.matmul %34, %32, %cst_24 {dimension_numbers = #tpu.dot_dimension_numbers<[1], [0], [0], [1], [0, 0, 1, 1], [], []>} : vector<8x4xf32>, vector<4x324xf32>, vector<8x324xf32> -> vector<8x324xf32>
    %36 = arith.addf %31, %35 : vector<8x324xf32>
    %37 = vector.extract_strided_slice %2 {offsets = [0, 37], sizes = [4, 324], strides = [1, 1]} : vector<4x362xf32> to vector<4x324xf32>
    %c7 = arith.constant 7 : index
    %c0_25 = arith.constant 0 : index
    %c0_26 = arith.constant 0 : index
    %38 = vector.load %arg2[%c7, %c0_25, %c0_26] : memref<9x8x4xf32, #tpu.memory_space<vmem>>, vector<1x8x4xf32>
    %39 = vector.shape_cast %38 : vector<1x8x4xf32> to vector<8x4xf32>
    %cst_27 = arith.constant dense<0.000000e+00> : vector<8x324xf32>
    %40 = tpu.matmul %39, %37, %cst_27 {dimension_numbers = #tpu.dot_dimension_numbers<[1], [0], [0], [1], [0, 0, 1, 1], [], []>} : vector<8x4xf32>, vector<4x324xf32>, vector<8x324xf32> -> vector<8x324xf32>
    %41 = arith.addf %36, %40 : vector<8x324xf32>
    %42 = vector.extract_strided_slice %2 {offsets = [0, 38], sizes = [4, 324], strides = [1, 1]} : vector<4x362xf32> to vector<4x324xf32>
    %c8 = arith.constant 8 : index
    %c0_28 = arith.constant 0 : index
    %c0_29 = arith.constant 0 : index
    %43 = vector.load %arg2[%c8, %c0_28, %c0_29] : memref<9x8x4xf32, #tpu.memory_space<vmem>>, vector<1x8x4xf32>
    %44 = vector.shape_cast %43 : vector<1x8x4xf32> to vector<8x4xf32>
    %cst_30 = arith.constant dense<0.000000e+00> : vector<8x324xf32>
    %45 = tpu.matmul %44, %42, %cst_30 {dimension_numbers = #tpu.dot_dimension_numbers<[1], [0], [0], [1], [0, 0, 1, 1], [], []>} : vector<8x4xf32>, vector<4x324xf32>, vector<8x324xf32> -> vector<8x324xf32>
    %46 = arith.addf %41, %45 : vector<8x324xf32>
    %47 = vector.broadcast %0 : vector<8x1xf32> to vector<8x324xf32>
    %48 = arith.addf %46, %47 : vector<8x324xf32>
    %c0_31 = arith.constant 0 : index
    %c0_32 = arith.constant 0 : index
    %c0_33 = arith.constant 0 : index
    %49 = vector.load %arg4[%c0_31, %c0_32, %c0_33] : memref<1x8x324xf32, #tpu.memory_space<vmem>>, vector<1x8x324xf32>
    %50 = vector.shape_cast %49 : vector<1x8x324xf32> to vector<8x324xf32>
    %51 = vector.shape_cast %48 : vector<8x324xf32> to vector<1x8x324xf32>
    tpu.vector_store %arg4[%c0_31, %c0_32, %c0_33], %51 {strides = array<i32>} : memref<1x8x324xf32, #tpu.memory_space<vmem>>, vector<1x8x324xf32>,
    return
  }
  func.func @transform_0(%arg0: i32) -> (i32, i32, i32) {
    %c0_i32 = arith.constant 0 : i32
    %c0_i32_0 = arith.constant 0 : i32
    %c0_i32_1 = arith.constant 0 : i32
    return %arg0, %c0_i32, %c0_i32_0 : i32, i32, i32
  }
  func.func @transform_1(%arg0: i32) -> (i32, i32, i32) {
    %c0_i32 = arith.constant 0 : i32
    %c0_i32_0 = arith.constant 0 : i32
    %c0_i32_1 = arith.constant 0 : i32
    %c0_i32_2 = arith.constant 0 : i32
    return %c0_i32, %c0_i32_0, %c0_i32_1 : i32, i32, i32
  }
  func.func @transform_2(%arg0: i32) -> (i32, i32) {
    %c0_i32 = arith.constant 0 : i32
    %c0_i32_0 = arith.constant 0 : i32
    %c0_i32_1 = arith.constant 0 : i32
    return %c0_i32, %c0_i32_0 : i32, i32
  }
  func.func @transform_3(%arg0: i32) -> (i32, i32, i32) {
    %c0_i32 = arith.constant 0 : i32
    %c0_i32_0 = arith.constant 0 : i32
    %c0_i32_1 = arith.constant 0 : i32
    return %arg0, %c0_i32, %c0_i32_0 : i32, i32, i32
  }
}

</mosaic_0001>

<llo_original>
// kernel: self_ensemble_forward.1
$region0: #{self_ensemble_forward.1}
  #allocation0 [shape = 'u32[]', space=smem, size = 0x4, offset = 0x4, fixed_abs, tag = 'smem constant byte address 0x4 - core index']
  #allocation1 [shape = 'u32[144,128]{1,0:T(1,128)}', space=vmem, size = 0x12000, scoped, tag = 'internal scratch']
  %s0 = inlined_call_operand.vmem [shape: f32[2,4,362], index: 0, kind: input, shape index: {}]
  %s1 = inlined_call_operand.vmem [shape: f32[9,8,4], index: 1, kind: input, shape index: {}]
  %s2 = inlined_call_operand.vmem [shape: f32[8,1], index: 2, kind: input, shape index: {}]
  %s3 = inlined_call_operand.vmem [shape: f32[2,8,324], index: 3, kind: output, shape index: {}]
  %s4 = sld [smem:[#allocation0]]
  $region45: #{self_ensemble_forward.1} parent=0
    _
  %s6 = ssub.s32 1, %s4
  %s7 = scalar_select 0, %s6, %s4
  loop: start=0, step=1, limit=4
  $region2: #{self_ensemble_forward.1} parent=0 // loop_pre_header
    _
  $region3: #{self_ensemble_forward.1} parent=0 // loop_header
    %s9 = sphi 0, %s13
    %p10 = scmp.ge.s32.totalorder %s9, 4
    %s19 = sphi 0, %s21
    %s22 = sphi 0, %s19
    %s23 = sphi 0, %s22
    %s39 = sphi 0, %s23
    %s43 = sphi 0, %s43
    %s45 = sphi 0, %s43
    %s46 = sphi 0, %s45
    %s60 = sphi 0, %s46
    %s64 = sphi 0, %s64
    %s66 = sphi 0, %s64
    %s67 = sphi 0, %s66
    %s81 = sphi 0, %s67
    %s87 = sphi 0, %s89
    %s90 = sphi 0, %s87
    %s91 = sphi 0, %s90
    %s107 = sphi 0, %s91
  $region4: #{self_ensemble_forward.1} parent=0 // loop_header_branch
    %12 = sbr.rel (%p10) target = $region8
  $region5: #{self_ensemble_forward.1} parent=0 // loop_body
    %s14 = ssub.s32 %s9, 1
    %s15 = ssub.s32 %s9, 2
    %s16 = sadd.s32 %s9, 1
    %s17 = ssub.s32 %s9, %s16
    %p18 = scmp.eq.s32.totalorder %s17, 0
    %s20 = sadd.s32 %s19, 1
    %s21 = scalar_select %p18, %s19, %s20
    %p24 = pneg %p18
    %p25 = scmp.eq.s32.totalorder %s9, 1
    %p26 = por %p24, %p25
    %p27 = scmp.ne.s32.totalorder %s19, %s22
    %p28 = scmp.eq.s32.totalorder %s9, 0
    %p29 = por %p27, %p28
    %p30 = scmp.ne.s32.totalorder %s19, %s22
    %p31 = scmp.eq.s32.totalorder %s14, 1
    %p32 = por %p30, %p31
    %p33 = scmp.ne.s32.totalorder %s22, %s23
    %p34 = scmp.eq.s32.totalorder %s14, 0
    %p35 = por %p33, %p34
    %p36 = scmp.ne.s32.totalorder %s22, %s23
    %p37 = scmp.eq.s32.totalorder %s15, 1
    %p38 = por %p36, %p37
    %p40 = scmp.ne.s32.totalorder %s23, %s39
    %p41 = scmp.eq.s32.totalorder %s15, 0
    %p42 = por %p40, %p41
    %s44 = sadd.s32 %s43, 1
    %p47 = scmp.eq.s32.totalorder %s9, 1
    %p48 = scmp.ne.s32.totalorder %s43, %s45
    %p49 = scmp.eq.s32.totalorder %s9, 0
    %p50 = por %p48, %p49
    %p51 = scmp.ne.s32.totalorder %s43, %s45
    %p52 = scmp.eq.s32.totalorder %s14, 1
    %p53 = por %p51, %p52
    %p54 = scmp.ne.s32.totalorder %s45, %s46
    %p55 = scmp.eq.s32.totalorder %s14, 0
    %p56 = por %p54, %p55
    %p57 = scmp.ne.s32.totalorder %s45, %s46
    %p58 = scmp.eq.s32.totalorder %s15, 1
    %p59 = por %p57, %p58
    %p61 = scmp.ne.s32.totalorder %s46, %s60
    %p62 = scmp.eq.s32.totalorder %s15, 0
    %p63 = por %p61, %p62
    %s65 = sadd.s32 %s64, 1
    %p68 = scmp.eq.s32.totalorder %s9, 1
    %p69 = scmp.ne.s32.totalorder %s64, %s66
    %p70 = scmp.eq.s32.totalorder %s9, 0
    %p71 = por %p69, %p70
    %p72 = scmp.ne.s32.totalorder %s64, %s66
    %p73 = scmp.eq.s32.totalorder %s14, 1
    %p74 = por %p72, %p73
    %p75 = scmp.ne.s32.totalorder %s66, %s67
    %p76 = scmp.eq.s32.totalorder %s14, 0
    %p77 = por %p75, %p76
    %p78 = scmp.ne.s32.totalorder %s66, %s67
    %p79 = scmp.eq.s32.totalorder %s15, 1
    %p80 = por %p78, %p79
    %p82 = scmp.ne.s32.totalorder %s67, %s81
    %p83 = scmp.eq.s32.totalorder %s15, 0
    %p84 = por %p82, %p83
    %s85 = ssub.s32 %s9, %s16
    %p86 = scmp.eq.s32.totalorder %s85, 0
    %s88 = sadd.s32 %s87, 1
    %s89 = scalar_select %p86, %s87, %s88
    %p92 = pneg %p86
    %p93 = scmp.eq.s32.totalorder %s9, 1
    %p94 = por %p92, %p93
    %p95 = scmp.ne.s32.totalorder %s87, %s90
    %p96 = scmp.eq.s32.totalorder %s9, 0
    %p97 = por %p95, %p96
    %p98 = scmp.ne.s32.totalorder %s87, %s90
    %p99 = scmp.eq.s32.totalorder %s14, 1
    %p100 = por %p98, %p99
    %p101 = scmp.ne.s32.totalorder %s90, %s91
    %p102 = scmp.eq.s32.totalorder %s14, 0
    %p103 = por %p101, %p102
    %p104 = scmp.ne.s32.totalorder %s90, %s91
    %p105 = scmp.eq.s32.totalorder %s15, 1
    %p106 = por %p104, %p105
    %p108 = scmp.ne.s32.totalorder %s91, %s107
    %p109 = scmp.eq.s32.totalorder %s15, 0
    %p110 = por %p108, %p109
    %p111 = scmp.le.s32.totalorder 1, %s9
    %p112 = scmp.lt.s32.totalorder %s9, 3
    %p113 = pnand %p111, %p112
    %p114 = pneg %p113
    // Predicated region
    $region9: #{self_ensemble_forward.1} parent=5 // pred_check
      _
    $region10: #{self_ensemble_forward.1} parent=5 // pred_check_branch
      %116 = sbr.rel (%p113) target = $region12
    $region11: #{self_ensemble_forward.1} parent=5 // pred_region
      %s117 = ssub.s32 %s9, 1
      // Predicated region
      $region13: #{self_ensemble_forward.1} parent=11 // pred_check
        %p118 = pneg %p56
      $region14: #{self_ensemble_forward.1} parent=11 // pred_check_branch
        %120 = sbr.rel (%p118) target = $region16
      $region15: #{self_ensemble_forward.1} parent=11 // pred_region
        _
      $region16: #{self_ensemble_forward.1} parent=11 // pred_fallthru
        _
      // Predicated region
      $region17: #{self_ensemble_forward.1} parent=11 // pred_check
        %p121 = pneg %p77
      $region18: #{self_ensemble_forward.1} parent=11 // pred_check_branch
        %123 = sbr.rel (%p121) target = $region20
      $region19: #{self_ensemble_forward.1} parent=11 // pred_region
        _
      $region20: #{self_ensemble_forward.1} parent=11 // pred_fallthru
        _
    $region12: #{self_ensemble_forward.1} parent=5 // pred_fallthru
      _
    %p124 = scmp.lt.s32.totalorder %s9, 2
    // Predicated region
    $region21: #{self_ensemble_forward.1} parent=5 // pred_check
      %p125 = pneg %p124
    $region22: #{self_ensemble_forward.1} parent=5 // pred_check_branch
      %127 = sbr.rel (%p125) target = $region24
    $region23: #{self_ensemble_forward.1} parent=5 // pred_region
      // Predicated region
      $region25: #{self_ensemble_forward.1} parent=23 // pred_check
        %p128 = pneg %p29
      $region26: #{self_ensemble_forward.1} parent=23 // pred_check_branch
        %130 = sbr.rel (%p128) target = $region28
      $region27: #{self_ensemble_forward.1} parent=23 // pred_region
        %p131 = scmp.lt.s32.totalorder %s9, 1
        %s132 = scalar_select %p131, %s9, 1
        %s133 = smul.addr %s132, 3
        %s134 = smul.addr %s133, 4
        %s135 = scalar_lea.vmem %s0, %s134
      $region28: #{self_ensemble_forward.1} parent=23 // pred_fallthru
        _
    $region24: #{self_ensemble_forward.1} parent=5 // pred_fallthru
      _
    %p136 = scmp.le.s32.totalorder 1, %s9
    %p137 = scmp.lt.s32.totalorder %s9, 3
    %p138 = pnand %p136, %p137
    %p139 = pneg %p138
    // Predicated region
    $region29: #{self_ensemble_forward.1} parent=5 // pred_check
      _
    $region30: #{self_ensemble_forward.1} parent=5 // pred_check_branch
      %141 = sbr.rel (%p138) target = $region32
    $region31: #{self_ensemble_forward.1} parent=5 // pred_region
      %s142 = ssub.s32 %s9, 1
      %p143 = scmp.lt.s32.totalorder %s14, 1
      %s144 = scalar_select %p143, %s14, 1
      %s145 = smul.addr %s144, 3
      %s146 = smul.addr %s145, 4
      %s147 = scalar_lea.vmem %s0, %s146
      %p148 = pneg %p35
      %p149 = pneg %p32
      %p150 = pneg %p56
      %p151 = pneg %p53
      %p152 = pneg %p77
      %p153 = pneg %p74
      %p154 = pneg %p103
      %p155 = pneg %p100
      %p156 = scmp.lt.s32.totalorder %s14, 1
      %s157 = scalar_select %p156, %s14, 1
      %s158 = smul.addr %s157, 3
      %s159 = smul.addr %s158, 8
      %s160 = scalar_lea.vmem %s3, %s159
      %p161 = scmp.lt.s32.totalorder %s14, 1
      %s162 = scalar_select %p161, %s14, 1
      %s163 = smul.addr %s162, 3
      %s164 = smul.addr %s163, 4
      %s165 = scalar_lea.vmem %s0, %s164
      %p166 = scmp.lt.s32.totalorder %s14, 1
      %s167 = scalar_select %p166, %s14, 1
      %s168 = smul.addr %s167, 3
      %s169 = smul.addr %s168, 8
      %s170 = scalar_lea.vmem %s3, %s169
      %v171 = vld [vmem:[%s2] sm:$0xff]
      %v172 = vld [vmem:[%s165] sm:$0xff]
      %v173 = vld [vmem:[%s165 + $0x8] sm:$0xf]
      %v174 = vld [vmem:[%s1] sm:$0xff]
      %s175 = scalar_lea.vmem %s1, 8
      %v176 = vld [vmem:[%s175] sm:$0xff]
      %v179 = vcombine.high %v172, %v172
      %180 = vrot.lane.b32.xlu0 %v172, 127
      %v181 = vpop.permute.xlu0 %180
      %182 = vrot.lane.b32.xlu0 %v179, 127
      %v183 = vpop.permute.xlu0 %182
      %184 = vrot.lane.b32.xlu0 %v173, 127
      %v185 = vpop.permute.xlu0 %184
      %vm186 = vcmask 1039360
      %v187 = vsel %vm186, %v181, %v183
      %v188 = vsel %vm186, %v183, %v185
      %vm189 = vcmask 31744
      %v191 = vsel %vm189, %v176, 0
      %vm193 = vcmask 1043456
      %v194 = vsel %vm193, %v187, 0
      %v196 = vsel %vm193, %v188, 0
      %v198 = vsel %vm193, %v185, 0
      %200 = vmatprep.subr.mxu0 %v196
      %201 = vmatpush1.msra.mxu0 %v194
      %202 = vmatprep.subr.mxu0 0.0
      %203 = vmatpush1.msra.mxu0 0.0
      %204 = vmatprep.subr.mxu0 0.0
      %205 = vmatpush1.msra.mxu0 0.0
      %206 = vmatprep.subr.mxu0 0.0
      %207 = vmatpush1.msra.mxu0 0.0
      %208 = vmatprep.subr.mxu0 0.0
      %209 = vmatpush1.msra.mxu0 0.0
      %210 = vmatprep.subr.mxu0 0.0
      %211 = vmatpush1.msra.mxu0 0.0
      %212 = vmatprep.subr.mxu0 0.0
      %213 = vmatpush1.msra.mxu0 0.0
      %214 = vmatprep.subr.mxu0 0.0
      %215 = vmatpush1.msra.mxu0 0.0
      %216 = vmatprep.subr.mxu0 0.0
      %217 = vmatpush1.msra.mxu0 0.0
      %218 = vmatprep.subr.mxu0 0.0
      %219 = vmatpush1.msra.mxu0 0.0
      %220 = vmatprep.subr.mxu0 0.0
      %221 = vmatpush1.msra.mxu0 0.0
      %222 = vmatprep.subr.mxu0 0.0
      %223 = vmatpush1.msra.mxu0 0.0
      %224 = vmatprep.subr.mxu0 0.0
      %225 = vmatpush1.msra.mxu0 0.0
      %226 = vmatprep.subr.mxu0 0.0
      %227 = vmatpush1.msra.mxu0 0.0
      %228 = vmatprep.subr.mxu0 0.0
      %229 = vmatpush1.msra.mxu0 0.0
      %230 = vmatprep.subr.mxu0 0.0
      %231 = vmatpush1.msra.mxu0 0.0
      %232 = vmatprep.subr.mxu0 0.0
      %233 = vmatpush1.msra.mxu0 0.0
      %234 = vmatprep.subr.mxu0 0.0
      %235 = vmatpush1.msra.mxu0 0.0
      %236 = vmatprep.subr.mxu0 0.0
      %237 = vmatpush1.msra.mxu0 0.0
      %238 = vmatprep.subr.mxu0 0.0
      %239 = vmatpush1.msra.mxu0 0.0
      %240 = vmatprep.subr.mxu0 0.0
      %241 = vmatpush1.msra.mxu0 0.0
      %242 = vmatprep.subr.mxu0 0.0
      %243 = vmatpush1.msra.mxu0 0.0
      %244 = vmatprep.subr.mxu0 0.0
      %245 = vmatpush1.msra.mxu0 0.0
      %246 = vmatprep.subr.mxu0 0.0
      %247 = vmatpush1.msra.mxu0 0.0
      %248 = vmatprep.subr.mxu0 0.0
      %249 = vmatpush1.msra.mxu0 0.0
      %250 = vmatprep.subr.mxu0 0.0
      %251 = vmatpush1.msra.mxu0 0.0
      %252 = vmatprep.subr.mxu0 0.0
      %253 = vmatpush1.msra.mxu0 0.0
      %254 = vmatprep.subr.mxu0 0.0
      %255 = vmatpush1.msra.mxu0 0.0
      %256 = vmatprep.subr.mxu0 0.0
      %257 = vmatpush1.msra.mxu0 0.0
      %258 = vmatprep.subr.mxu0 0.0
      %259 = vmatpush1.msra.mxu0 0.0
      %260 = vmatprep.subr.mxu0 0.0
      %261 = vmatpush1.msra.mxu0 0.0
      %262 = vmatprep.subr.mxu0 0.0
      %263 = vmatpush1.msra.mxu0 0.0
      %264 = vmatprep.mubr.f32.mxu0 0.0
      %265 = vmatmul.mubr.f32.gmra.mrb[0].mxu0 %v191
      %v266 = vpop.f32.mrb[0].mxu0
      %v267 = vadd.f32 0.0, %v266
      %v268 = vpop.f32.mrb[0].mxu0
      %v269 = vadd.f32 0.0, %v268
      %270 = vdwg.mxu0
      %271 = vmatprep.subr.mxu0 0.0
      %272 = vmatpush1.msra.mxu0 %v198
      %273 = vmatprep.subr.mxu0 0.0
      %274 = vmatpush1.msra.mxu0 0.0
      %275 = vmatprep.subr.mxu0 0.0
      %276 = vmatpush1.msra.mxu0 0.0
      %277 = vmatprep.subr.mxu0 0.0
      %278 = vmatpush1.msra.mxu0 0.0
      %279 = vmatprep.subr.mxu0 0.0
      %280 = vmatpush1.msra.mxu0 0.0
      %281 = vmatprep.subr.mxu0 0.0
      %282 = vmatpush1.msra.mxu0 0.0
      %283 = vmatprep.subr.mxu0 0.0
      %284 = vmatpush1.msra.mxu0 0.0
      %285 = vmatprep.subr.mxu0 0.0
      %286 = vmatpush1.msra.mxu0 0.0
      %287 = vmatprep.subr.mxu0 0.0
      %288 = vmatpush1.msra.mxu0 0.0
      %289 = vmatprep.subr.mxu0 0.0
      %290 = vmatpush1.msra.mxu0 0.0
      %291 = vmatprep.subr.mxu0 0.0
      %292 = vmatpush1.msra.mxu0 0.0
      %293 = vmatprep.subr.mxu0 0.0
      %294 = vmatpush1.msra.mxu0 0.0
      %295 = vmatprep.subr.mxu0 0.0
      %296 = vmatpush1.msra.mxu0 0.0
      %297 = vmatprep.subr.mxu0 0.0
      %298 = vmatpush1.msra.mxu0 0.0
      %299 = vmatprep.subr.mxu0 0.0
      %300 = vmatpush1.msra.mxu0 0.0
      %301 = vmatprep.subr.mxu0 0.0
      %302 = vmatpush1.msra.mxu0 0.0
      %303 = vmatprep.subr.mxu0 0.0
      %304 = vmatpush1.msra.mxu0 0.0
      %305 = vmatprep.subr.mxu0 0.0
      %306 = vmatpush1.msra.mxu0 0.0
      %307 = vmatprep.subr.mxu0 0.0
      %308 = vmatpush1.msra.mxu0 0.0
      %309 = vmatprep.subr.mxu0 0.0
      %310 = vmatpush1.msra.mxu0 0.0
      %311 = vmatprep.subr.mxu0 0.0
      %312 = vmatpush1.msra.mxu0 0.0
      %313 = vmatprep.subr.mxu0 0.0
      %314 = vmatpush1.msra.mxu0 0.0
      %315 = vmatprep.subr.mxu0 0.0
      %316 = vmatpush1.msra.mxu0 0.0
      %317 = vmatprep.subr.mxu0 0.0
      %318 = vmatpush1.msra.mxu0 0.0
      %319 = vmatprep.subr.mxu0 0.0
      %320 = vmatpush1.msra.mxu0 0.0
      %321 = vmatprep.subr.mxu0 0.0
      %322 = vmatpush1.msra.mxu0 0.0
      %323 = vmatprep.subr.mxu0 0.0
      %324 = vmatpush1.msra.mxu0 0.0
      %325 = vmatprep.subr.mxu0 0.0
      %326 = vmatpush1.msra.mxu0 0.0
      %327 = vmatprep.subr.mxu0 0.0
      %328 = vmatpush1.msra.mxu0 0.0
      %329 = vmatprep.subr.mxu0 0.0
      %330 = vmatpush1.msra.mxu0 0.0
      %331 = vmatprep.subr.mxu0 0.0
      %332 = vmatpush1.msra.mxu0 0.0
      %333 = vmatprep.subr.mxu0 0.0
      %334 = vmatpush1.msra.mxu0 0.0
      %335 = vmatprep.mubr.f32.mxu0 0.0
      %336 = vmatmul.mubr.f32.gmra.mrb[0].mxu0 %v191
      %v337 = vpop.f32.mrb[0].mxu0
      %v338 = vadd.f32 0.0, %v337
      %v339 = vpop.f32.mrb[0].mxu0
      %340 = vdwg.mxu0
      %v342 = vsel %vm189, %v174, 0
      %v344 = vsel %vm193, %v172, 0
      %v346 = vsel %vm193, %v179, 0
      %v348 = vsel %vm193, %v173, 0
      %350 = vmatprep.subr.mxu0 %v346
      %351 = vmatpush1.msra.mxu0 %v344
      %352 = vmatprep.subr.mxu0 0.0
      %353 = vmatpush1.msra.mxu0 0.0
      %354 = vmatprep.subr.mxu0 0.0
      %355 = vmatpush1.msra.mxu0 0.0
      %356 = vmatprep.subr.mxu0 0.0
      %357 = vmatpush1.msra.mxu0 0.0
      %358 = vmatprep.subr.mxu0 0.0
      %359 = vmatpush1.msra.mxu0 0.0
      %360 = vmatprep.subr.mxu0 0.0
      %361 = vmatpush1.msra.mxu0 0.0
      %362 = vmatprep.subr.mxu0 0.0
      %363 = vmatpush1.msra.mxu0 0.0
      %364 = vmatprep.subr.mxu0 0.0
      %365 = vmatpush1.msra.mxu0 0.0
      %366 = vmatprep.subr.mxu0 0.0
      %367 = vmatpush1.msra.mxu0 0.0
      %368 = vmatprep.subr.mxu0 0.0
      %369 = vmatpush1.msra.mxu0 0.0
      %370 = vmatprep.subr.mxu0 0.0
      %371 = vmatpush1.msra.mxu0 0.0
      %372 = vmatprep.subr.mxu0 0.0
      %373 = vmatpush1.msra.mxu0 0.0
      %374 = vmatprep.subr.mxu0 0.0
      %375 = vmatpush1.msra.mxu0 0.0
      %376 = vmatprep.subr.mxu0 0.0
      %377 = vmatpush1.msra.mxu0 0.0
      %378 = vmatprep.subr.mxu0 0.0
      %379 = vmatpush1.msra.mxu0 0.0
      %380 = vmatprep.subr.mxu0 0.0
      %381 = vmatpush1.msra.mxu0 0.0
      %382 = vmatprep.subr.mxu0 0.0
      %383 = vmatpush1.msra.mxu0 0.0
      %384 = vmatprep.subr.mxu0 0.0
      %385 = vmatpush1.msra.mxu0 0.0
      %386 = vmatprep.subr.mxu0 0.0
      %387 = vmatpush1.msra.mxu0 0.0
      %388 = vmatprep.subr.mxu0 0.0
      %389 = vmatpush1.msra.mxu0 0.0
      %390 = vmatprep.subr.mxu0 0.0
      %391 = vmatpush1.msra.mxu0 0.0
      %392 = vmatprep.subr.mxu0 0.0
      %393 = vmatpush1.msra.mxu0 0.0
      %394 = vmatprep.subr.mxu0 0.0
      %395 = vmatpush1.msra.mxu0 0.0
      %396 = vmatprep.subr.mxu0 0.0
      %397 = vmatpush1.msra.mxu0 0.0
      %398 = vmatprep.subr.mxu0 0.0
      %399 = vmatpush1.msra.mxu0 0.0
      %400 = vmatprep.subr.mxu0 0.0
      %401 = vmatpush1.msra.mxu0 0.0
      %402 = vmatprep.subr.mxu0 0.0
      %403 = vmatpush1.msra.mxu0 0.0
      %404 = vmatprep.subr.mxu0 0.0
      %405 = vmatpush1.msra.mxu0 0.0
      %406 = vmatprep.subr.mxu0 0.0
      %407 = vmatpush1.msra.mxu0 0.0
      %408 = vmatprep.subr.mxu0 0.0
      %409 = vmatpush1.msra.mxu0 0.0
      %410 = vmatprep.subr.mxu0 0.0
      %411 = vmatpush1.msra.mxu0 0.0
      %412 = vmatprep.subr.mxu0 0.0
      %413 = vmatpush1.msra.mxu0 0.0
      %414 = vmatprep.mubr.f32.mxu0 0.0
      %415 = vmatmul.mubr.f32.gmra.mrb[0].mxu0 %v342
      %v416 = vpop.f32.mrb[0].mxu0
      %v417 = vadd.f32 %v267, %v416
      %v418 = vpop.f32.mrb[0].mxu0
      %v419 = vadd.f32 %v269, %v418
      %420 = vdwg.mxu0
      %421 = vmatprep.subr.mxu0 0.0
      %422 = vmatpush1.msra.mxu0 %v348
      %423 = vmatprep.subr.mxu0 0.0
      %424 = vmatpush1.msra.mxu0 0.0
      %425 = vmatprep.subr.mxu0 0.0
      %426 = vmatpush1.msra.mxu0 0.0
      %427 = vmatprep.subr.mxu0 0.0
      %428 = vmatpush1.msra.mxu0 0.0
      %429 = vmatprep.subr.mxu0 0.0
      %430 = vmatpush1.msra.mxu0 0.0
      %431 = vmatprep.subr.mxu0 0.0
      %432 = vmatpush1.msra.mxu0 0.0
      %433 = vmatprep.subr.mxu0 0.0
      %434 = vmatpush1.msra.mxu0 0.0
      %435 = vmatprep.subr.mxu0 0.0
      %436 = vmatpush1.msra.mxu0 0.0
      %437 = vmatprep.subr.mxu0 0.0
      %438 = vmatpush1.msra.mxu0 0.0
      %439 = vmatprep.subr.mxu0 0.0
      %440 = vmatpush1.msra.mxu0 0.0
      %441 = vmatprep.subr.mxu0 0.0
      %442 = vmatpush1.msra.mxu0 0.0
      %443 = vmatprep.subr.mxu0 0.0
      %444 = vmatpush1.msra.mxu0 0.0
      %445 = vmatprep.subr.mxu0 0.0
      %446 = vmatpush1.msra.mxu0 0.0
      %447 = vmatprep.subr.mxu0 0.0
      %448 = vmatpush1.msra.mxu0 0.0
      %449 = vmatprep.subr.mxu0 0.0
      %450 = vmatpush1.msra.mxu0 0.0
      %451 = vmatprep.subr.mxu0 0.0
      %452 = vmatpush1.msra.mxu0 0.0
      %453 = vmatprep.subr.mxu0 0.0
      %454 = vmatpush1.msra.mxu0 0.0
      %455 = vmatprep.subr.mxu0 0.0
      %456 = vmatpush1.msra.mxu0 0.0
      %457 = vmatprep.subr.mxu0 0.0
      %458 = vmatpush1.msra.mxu0 0.0
      %459 = vmatprep.subr.mxu0 0.0
      %460 = vmatpush1.msra.mxu0 0.0
      %461 = vmatprep.subr.mxu0 0.0
      %462 = vmatpush1.msra.mxu0 0.0
      %463 = vmatprep.subr.mxu0 0.0
      %464 = vmatpush1.msra.mxu0 0.0
      %465 = vmatprep.subr.mxu0 0.0
      %466 = vmatpush1.msra.mxu0 0.0
      %467 = vmatprep.subr.mxu0 0.0
      %468 = vmatpush1.msra.mxu0 0.0
      %469 = vmatprep.subr.mxu0 0.0
      %470 = vmatpush1.msra.mxu0 0.0
      %471 = vmatprep.subr.mxu0 0.0
      %472 = vmatpush1.msra.mxu0 0.0
      %473 = vmatprep.subr.mxu0 0.0
      %474 = vmatpush1.msra.mxu0 0.0
      %475 = vmatprep.subr.mxu0 0.0
      %476 = vmatpush1.msra.mxu0 0.0
      %477 = vmatprep.subr.mxu0 0.0
      %478 = vmatpush1.msra.mxu0 0.0
      %479 = vmatprep.subr.mxu0 0.0
      %480 = vmatpush1.msra.mxu0 0.0
      %481 = vmatprep.subr.mxu0 0.0
      %482 = vmatpush1.msra.mxu0 0.0
      %483 = vmatprep.subr.mxu0 0.0
      %484 = vmatpush1.msra.mxu0 0.0
      %485 = vmatprep.mubr.f32.mxu0 0.0
      %486 = vmatmul.mubr.f32.gmra.mrb[0].mxu0 %v342
      %v487 = vpop.f32.mrb[0].mxu0
      %v488 = vadd.f32 %v338, %v487
      %v489 = vpop.f32.mrb[0].mxu0
      %490 = vdwg.mxu0
      %s491 = scalar_lea.vmem %s1, 16
      %v492 = vld [vmem:[%s491] sm:$0xff]
      %493 = vrot.lane.b32.xlu0 %v172, 126
      %v494 = vpop.permute.xlu0 %493
      %495 = vrot.lane.b32.xlu0 %v179, 126
      %v496 = vpop.permute.xlu0 %495
      %497 = vrot.lane.b32.xlu0 %v173, 126
      %v498 = vpop.permute.xlu0 %497
      %vm499 = vcmask 1031168
      %v500 = vsel %vm499, %v494, %v496
      %v501 = vsel %vm499, %v496, %v498
      %v503 = vsel %vm189, %v492, 0
      %v505 = vsel %vm193, %v500, 0
      %v507 = vsel %vm193, %v501, 0
      %v509 = vsel %vm193, %v498, 0
      %511 = vmatprep.subr.mxu0 %v507
      %512 = vmatpush1.msra.mxu0 %v505
      %513 = vmatprep.subr.mxu0 0.0
      %514 = vmatpush1.msra.mxu0 0.0
      %515 = vmatprep.subr.mxu0 0.0
      %516 = vmatpush1.msra.mxu0 0.0
      %517 = vmatprep.subr.mxu0 0.0
      %518 = vmatpush1.msra.mxu0 0.0
      %519 = vmatprep.subr.mxu0 0.0
      %520 = vmatpush1.msra.mxu0 0.0
      %521 = vmatprep.subr.mxu0 0.0
      %522 = vmatpush1.msra.mxu0 0.0
      %523 = vmatprep.subr.mxu0 0.0
      %524 = vmatpush1.msra.mxu0 0.0
      %525 = vmatprep.subr.mxu0 0.0
      %526 = vmatpush1.msra.mxu0 0.0
      %527 = vmatprep.subr.mxu0 0.0
      %528 = vmatpush1.msra.mxu0 0.0
      %529 = vmatprep.subr.mxu0 0.0
      %530 = vmatpush1.msra.mxu0 0.0
      %531 = vmatprep.subr.mxu0 0.0
      %532 = vmatpush1.msra.mxu0 0.0
      %533 = vmatprep.subr.mxu0 0.0
      %534 = vmatpush1.msra.mxu0 0.0
      %535 = vmatprep.subr.mxu0 0.0
      %536 = vmatpush1.msra.mxu0 0.0
      %537 = vmatprep.subr.mxu0 0.0
      %538 = vmatpush1.msra.mxu0 0.0
      %539 = vmatprep.subr.mxu0 0.0
      %540 = vmatpush1.msra.mxu0 0.0
      %541 = vmatprep.subr.mxu0 0.0
      %542 = vmatpush1.msra.mxu0 0.0
      %543 = vmatprep.subr.mxu0 0.0
      %544 = vmatpush1.msra.mxu0 0.0
      %545 = vmatprep.subr.mxu0 0.0
      %546 = vmatpush1.msra.mxu0 0.0
      %547 = vmatprep.subr.mxu0 0.0
      %548 = vmatpush1.msra.mxu0 0.0
      %549 = vmatprep.subr.mxu0 0.0
      %550 = vmatpush1.msra.mxu0 0.0
      %551 = vmatprep.subr.mxu0 0.0
      %552 = vmatpush1.msra.mxu0 0.0
      %553 = vmatprep.subr.mxu0 0.0
      %554 = vmatpush1.msra.mxu0 0.0
      %555 = vmatprep.subr.mxu0 0.0
      %556 = vmatpush1.msra.mxu0 0.0
      %557 = vmatprep.subr.mxu0 0.0
      %558 = vmatpush1.msra.mxu0 0.0
      %559 = vmatprep.subr.mxu0 0.0
      %560 = vmatpush1.msra.mxu0 0.0
      %561 = vmatprep.subr.mxu0 0.0
      %562 = vmatpush1.msra.mxu0 0.0
      %563 = vmatprep.subr.mxu0 0.0
      %564 = vmatpush1.msra.mxu0 0.0
      %565 = vmatprep.subr.mxu0 0.0
      %566 = vmatpush1.msra.mxu0 0.0
      %567 = vmatprep.subr.mxu0 0.0
      %568 = vmatpush1.msra.mxu0 0.0
      %569 = vmatprep.subr.mxu0 0.0
      %570 = vmatpush1.msra.mxu0 0.0
      %571 = vmatprep.subr.mxu0 0.0
      %572 = vmatpush1.msra.mxu0 0.0
      %573 = vmatprep.subr.mxu0 0.0
      %574 = vmatpush1.msra.mxu0 0.0
      %575 = vmatprep.mubr.f32.mxu0 0.0
      %576 = vmatmul.mubr.f32.gmra.mrb[0].mxu0 %v503
      %v577 = vpop.f32.mrb[0].mxu0
      %v578 = vadd.f32 0.0, %v577
      %v579 = vpop.f32.mrb[0].mxu0
      %v580 = vadd.f32 0.0, %v579
      %581 = vdwg.mxu0
      %582 = vmatprep.subr.mxu0 0.0
      %583 = vmatpush1.msra.mxu0 %v509
      %584 = vmatprep.subr.mxu0 0.0
      %585 = vmatpush1.msra.mxu0 0.0
      %586 = vmatprep.subr.mxu0 0.0
      %587 = vmatpush1.msra.mxu0 0.0
      %588 = vmatprep.subr.mxu0 0.0
      %589 = vmatpush1.msra.mxu0 0.0
      %590 = vmatprep.subr.mxu0 0.0
      %591 = vmatpush1.msra.mxu0 0.0
      %592 = vmatprep.subr.mxu0 0.0
      %593 = vmatpush1.msra.mxu0 0.0
      %594 = vmatprep.subr.mxu0 0.0
      %595 = vmatpush1.msra.mxu0 0.0
      %596 = vmatprep.subr.mxu0 0.0
      %597 = vmatpush1.msra.mxu0 0.0
      %598 = vmatprep.subr.mxu0 0.0
      %599 = vmatpush1.msra.mxu0 0.0
      %600 = vmatprep.subr.mxu0 0.0
      %601 = vmatpush1.msra.mxu0 0.0
      %602 = vmatprep.subr.mxu0 0.0
      %603 = vmatpush1.msra.mxu0 0.0
      %604 = vmatprep.subr.mxu0 0.0
      %605 = vmatpush1.msra.mxu0 0.0
      %606 = vmatprep.subr.mxu0 0.0
      %607 = vmatpush1.msra.mxu0 0.0
      %608 = vmatprep.subr.mxu0 0.0
      %609 = vmatpush1.msra.mxu0 0.0
      %610 = vmatprep.subr.mxu0 0.0
      %611 = vmatpush1.msra.mxu0 0.0
      %612 = vmatprep.subr.mxu0 0.0
      %613 = vmatpush1.msra.mxu0 0.0
      %614 = vmatprep.subr.mxu0 0.0
      %615 = vmatpush1.msra.mxu0 0.0
      %616 = vmatprep.subr.mxu0 0.0
      %617 = vmatpush1.msra.mxu0 0.0
      %618 = vmatprep.subr.mxu0 0.0
      %619 = vmatpush1.msra.mxu0 0.0
      %620 = vmatprep.subr.mxu0 0.0
      %621 = vmatpush1.msra.mxu0 0.0
      %622 = vmatprep.subr.mxu0 0.0
      %623 = vmatpush1.msra.mxu0 0.0
      %624 = vmatprep.subr.mxu0 0.0
      %625 = vmatpush1.msra.mxu0 0.0
      %626 = vmatprep.subr.mxu0 0.0
      %627 = vmatpush1.msra.mxu0 0.0
      %628 = vmatprep.subr.mxu0 0.0
      %629 = vmatpush1.msra.mxu0 0.0
      %630 = vmatprep.subr.mxu0 0.0
      %631 = vmatpush1.msra.mxu0 0.0
      %632 = vmatprep.subr.mxu0 0.0
      %633 = vmatpush1.msra.mxu0 0.0
      %634 = vmatprep.subr.mxu0 0.0
      %635 = vmatpush1.msra.mxu0 0.0
      %636 = vmatprep.subr.mxu0 0.0
      %637 = vmatpush1.msra.mxu0 0.0
      %638 = vmatprep.subr.mxu0 0.0
      %639 = vmatpush1.msra.mxu0 0.0
      %640 = vmatprep.subr.mxu0 0.0
      %641 = vmatpush1.msra.mxu0 0.0
      %642 = vmatprep.subr.mxu0 0.0
      %643 = vmatpush1.msra.mxu0 0.0
      %644 = vmatprep.subr.mxu0 0.0
      %645 = vmatpush1.msra.mxu0 0.0
      %646 = vmatprep.mubr.f32.mxu0 0.0
      %647 = vmatmul.mubr.f32.gmra.mrb[0].mxu0 %v503
      %v648 = vpop.f32.mrb[0].mxu0
      %v649 = vadd.f32 0.0, %v648
      %v650 = vpop.f32.mrb[0].mxu0
      %651 = vdwg.mxu0
      %v652 = vadd.f32 %v417, %v578
      %v653 = vadd.f32 %v419, %v580
      %v654 = vadd.f32 %v488, %v649
      %s655 = scalar_lea.vmem %s1, 24
      %v656 = vld [vmem:[%s655] sm:$0xff]
      %657 = vrot.lane.b32.xlu0 %v172, 110
      %v658 = vpop.permute.xlu0 %657
      %659 = vrot.lane.b32.xlu0 %v179, 110
      %v660 = vpop.permute.xlu0 %659
      %661 = vrot.lane.b32.xlu0 %v173, 110
      %v662 = vpop.permute.xlu0 %661
      %vm663 = vcmask 900096
      %v664 = vsel %vm663, %v658, %v660
      %v665 = vsel %vm663, %v660, %v662
      %v667 = vsel %vm189, %v656, 0
      %v669 = vsel %vm193, %v664, 0
      %v671 = vsel %vm193, %v665, 0
      %v673 = vsel %vm193, %v662, 0
      %675 = vmatprep.subr.mxu0 %v671
      %676 = vmatpush1.msra.mxu0 %v669
      %677 = vmatprep.subr.mxu0 0.0
      %678 = vmatpush1.msra.mxu0 0.0
      %679 = vmatprep.subr.mxu0 0.0
      %680 = vmatpush1.msra.mxu0 0.0
      %681 = vmatprep.subr.mxu0 0.0
      %682 = vmatpush1.msra.mxu0 0.0
      %683 = vmatprep.subr.mxu0 0.0
      %684 = vmatpush1.msra.mxu0 0.0
      %685 = vmatprep.subr.mxu0 0.0
      %686 = vmatpush1.msra.mxu0 0.0
      %687 = vmatprep.subr.mxu0 0.0
      %688 = vmatpush1.msra.mxu0 0.0
      %689 = vmatprep.subr.mxu0 0.0
      %690 = vmatpush1.msra.mxu0 0.0
      %691 = vmatprep.subr.mxu0 0.0
      %692 = vmatpush1.msra.mxu0 0.0
      %693 = vmatprep.subr.mxu0 0.0
      %694 = vmatpush1.msra.mxu0 0.0
      %695 = vmatprep.subr.mxu0 0.0
      %696 = vmatpush1.msra.mxu0 0.0
      %697 = vmatprep.subr.mxu0 0.0
      %698 = vmatpush1.msra.mxu0 0.0
      %699 = vmatprep.subr.mxu0 0.0
      %700 = vmatpush1.msra.mxu0 0.0
      %701 = vmatprep.subr.mxu0 0.0
      %702 = vmatpush1.msra.mxu0 0.0
      %703 = vmatprep.subr.mxu0 0.0
      %704 = vmatpush1.msra.mxu0 0.0
      %705 = vmatprep.subr.mxu0 0.0
      %706 = vmatpush1.msra.mxu0 0.0
      %707 = vmatprep.subr.mxu0 0.0
      %708 = vmatpush1.msra.mxu0 0.0
      %709 = vmatprep.subr.mxu0 0.0
      %710 = vmatpush1.msra.mxu0 0.0
      %711 = vmatprep.subr.mxu0 0.0
      %712 = vmatpush1.msra.mxu0 0.0
      %713 = vmatprep.subr.mxu0 0.0
      %714 = vmatpush1.msra.mxu0 0.0
      %715 = vmatprep.subr.mxu0 0.0
      %716 = vmatpush1.msra.mxu0 0.0
      %717 = vmatprep.subr.mxu0 0.0
      %718 = vmatpush1.msra.mxu0 0.0
      %719 = vmatprep.subr.mxu0 0.0
      %720 = vmatpush1.msra.mxu0 0.0
      %721 = vmatprep.subr.mxu0 0.0
      %722 = vmatpush1.msra.mxu0 0.0
      %723 = vmatprep.subr.mxu0 0.0
      %724 = vmatpush1.msra.mxu0 0.0
      %725 = vmatprep.subr.mxu0 0.0
      %726 = vmatpush1.msra.mxu0 0.0
      %727 = vmatprep.subr.mxu0 0.0
      %728 = vmatpush1.msra.mxu0 0.0
      %729 = vmatprep.subr.mxu0 0.0
      %730 = vmatpush1.msra.mxu0 0.0
      %731 = vmatprep.subr.mxu0 0.0
      %732 = vmatpush1.msra.mxu0 0.0
      %733 = vmatprep.subr.mxu0 0.0
      %734 = vmatpush1.msra.mxu0 0.0
      %735 = vmatprep.subr.mxu0 0.0
      %736 = vmatpush1.msra.mxu0 0.0
      %737 = vmatprep.subr.mxu0 0.0
      %738 = vmatpush1.msra.mxu0 0.0
      %739 = vmatprep.mubr.f32.mxu0 0.0
      %740 = vmatmul.mubr.f32.gmra.mrb[0].mxu0 %v667
      %v741 = vpop.f32.mrb[0].mxu0
      %v742 = vadd.f32 0.0, %v741
      %v743 = vpop.f32.mrb[0].mxu0
      %v744 = vadd.f32 0.0, %v743
      %745 = vdwg.mxu0
      %746 = vmatprep.subr.mxu0 0.0
      %747 = vmatpush1.msra.mxu0 %v673
      %748 = vmatprep.subr.mxu0 0.0
      %749 = vmatpush1.msra.mxu0 0.0
      %750 = vmatprep.subr.mxu0 0.0
      %751 = vmatpush1.msra.mxu0 0.0
      %752 = vmatprep.subr.mxu0 0.0
      %753 = vmatpush1.msra.mxu0 0.0
      %754 = vmatprep.subr.mxu0 0.0
      %755 = vmatpush1.msra.mxu0 0.0
      %756 = vmatprep.subr.mxu0 0.0
      %757 = vmatpush1.msra.mxu0 0.0
      %758 = vmatprep.subr.mxu0 0.0
      %759 = vmatpush1.msra.mxu0 0.0
      %760 = vmatprep.subr.mxu0 0.0
      %761 = vmatpush1.msra.mxu0 0.0
      %762 = vmatprep.subr.mxu0 0.0
      %763 = vmatpush1.msra.mxu0 0.0
      %764 = vmatprep.subr.mxu0 0.0
      %765 = vmatpush1.msra.mxu0 0.0
      %766 = vmatprep.subr.mxu0 0.0
      %767 = vmatpush1.msra.mxu0 0.0
      %768 = vmatprep.subr.mxu0 0.0
      %769 = vmatpush1.msra.mxu0 0.0
      %770 = vmatprep.subr.mxu0 0.0
      %771 = vmatpush1.msra.mxu0 0.0
      %772 = vmatprep.subr.mxu0 0.0
      %773 = vmatpush1.msra.mxu0 0.0
      %774 = vmatprep.subr.mxu0 0.0
      %775 = vmatpush1.msra.mxu0 0.0
      %776 = vmatprep.subr.mxu0 0.0
      %777 = vmatpush1.msra.mxu0 0.0
      %778 = vmatprep.subr.mxu0 0.0
      %779 = vmatpush1.msra.mxu0 0.0
      %780 = vmatprep.subr.mxu0 0.0
      %781 = vmatpush1.msra.mxu0 0.0
      %782 = vmatprep.subr.mxu0 0.0
      %783 = vmatpush1.msra.mxu0 0.0
      %784 = vmatprep.subr.mxu0 0.0
      %785 = vmatpush1.msra.mxu0 0.0
      %786 = vmatprep.subr.mxu0 0.0
      %787 = vmatpush1.msra.mxu0 0.0
      %788 = vmatprep.subr.mxu0 0.0
      %789 = vmatpush1.msra.mxu0 0.0
      %790 = vmatprep.subr.mxu0 0.0
      %791 = vmatpush1.msra.mxu0 0.0
      %792 = vmatprep.subr.mxu0 0.0
      %793 = vmatpush1.msra.mxu0 0.0
      %794 = vmatprep.subr.mxu0 0.0
      %795 = vmatpush1.msra.mxu0 0.0
      %796 = vmatprep.subr.mxu0 0.0
      %797 = vmatpush1.msra.mxu0 0.0
      %798 = vmatprep.subr.mxu0 0.0
      %799 = vmatpush1.msra.mxu0 0.0
      %800 = vmatprep.subr.mxu0 0.0
      %801 = vmatpush1.msra.mxu0 0.0
      %802 = vmatprep.subr.mxu0 0.0
      %803 = vmatpush1.msra.mxu0 0.0
      %804 = vmatprep.subr.mxu0 0.0
      %805 = vmatpush1.msra.mxu0 0.0
      %806 = vmatprep.subr.mxu0 0.0
      %807 = vmatpush1.msra.mxu0 0.0
      %808 = vmatprep.subr.mxu0 0.0
      %809 = vmatpush1.msra.mxu0 0.0
      %810 = vmatprep.mubr.f32.mxu0 0.0
      %811 = vmatmul.mubr.f32.gmra.mrb[0].mxu0 %v667
      %v812 = vpop.f32.mrb[0].mxu0
      %v813 = vadd.f32 0.0, %v812
      %v814 = vpop.f32.mrb[0].mxu0
      %815 = vdwg.mxu0
      %v816 = vadd.f32 %v652, %v742
      %v817 = vadd.f32 %v653, %v744
      %v818 = vadd.f32 %v654, %v813
      %s819 = scalar_lea.vmem %s1, 32
      %v820 = vld [vmem:[%s819] sm:$0xff]
      %821 = vrot.lane.b32.xlu0 %v172, 109
      %v822 = vpop.permute.xlu0 %821
      %823 = vrot.lane.b32.xlu0 %v179, 109
      %v824 = vpop.permute.xlu0 %823
      %825 = vrot.lane.b32.xlu0 %v173, 109
      %v826 = vpop.permute.xlu0 %825
      %vm827 = vcmask 891904
      %v828 = vsel %vm827, %v822, %v824
      %v829 = vsel %vm827, %v824, %v826
      %v831 = vsel %vm189, %v820, 0
      %v833 = vsel %vm193, %v828, 0
      %v835 = vsel %vm193, %v829, 0
      %v837 = vsel %vm193, %v826, 0
      %839 = vmatprep.subr.mxu0 %v835
      %840 = vmatpush1.msra.mxu0 %v833
      %841 = vmatprep.subr.mxu0 0.0
      %842 = vmatpush1.msra.mxu0 0.0
      %843 = vmatprep.subr.mxu0 0.0
      %844 = vmatpush1.msra.mxu0 0.0
      %845 = vmatprep.subr.mxu0 0.0
      %846 = vmatpush1.msra.mxu0 0.0
      %847 = vmatprep.subr.mxu0 0.0
      %848 = vmatpush1.msra.mxu0 0.0
      %849 = vmatprep.subr.mxu0 0.0
      %850 = vmatpush1.msra.mxu0 0.0
      %851 = vmatprep.subr.mxu0 0.0
      %852 = vmatpush1.msra.mxu0 0.0
      %853 = vmatprep.subr.mxu0 0.0
      %854 = vmatpush1.msra.mxu0 0.0
      %855 = vmatprep.subr.mxu0 0.0
      %856 = vmatpush1.msra.mxu0 0.0
      %857 = vmatprep.subr.mxu0 0.0
      %858 = vmatpush1.msra.mxu0 0.0
      %859 = vmatprep.subr.mxu0 0.0
      %860 = vmatpush1.msra.mxu0 0.0
      %861 = vmatprep.subr.mxu0 0.0
      %862 = vmatpush1.msra.mxu0 0.0
      %863 = vmatprep.subr.mxu0 0.0
      %864 = vmatpush1.msra.mxu0 0.0
      %865 = vmatprep.subr.mxu0 0.0
      %866 = vmatpush1.msra.mxu0 0.0
      %867 = vmatprep.subr.mxu0 0.0
      %868 = vmatpush1.msra.mxu0 0.0
      %869 = vmatprep.subr.mxu0 0.0
      %870 = vmatpush1.msra.mxu0 0.0
      %871 = vmatprep.subr.mxu0 0.0
      %872 = vmatpush1.msra.mxu0 0.0
      %873 = vmatprep.subr.mxu0 0.0
      %874 = vmatpush1.msra.mxu0 0.0
      %875 = vmatprep.subr.mxu0 0.0
      %876 = vmatpush1.msra.mxu0 0.0
      %877 = vmatprep.subr.mxu0 0.0
      %878 = vmatpush1.msra.mxu0 0.0
      %879 = vmatprep.subr.mxu0 0.0
      %880 = vmatpush1.msra.mxu0 0.0
      %881 = vmatprep.subr.mxu0 0.0
      %882 = vmatpush1.msra.mxu0 0.0
      %883 = vmatprep.subr.mxu0 0.0
      %884 = vmatpush1.msra.mxu0 0.0
      %885 = vmatprep.subr.mxu0 0.0
      %886 = vmatpush1.msra.mxu0 0.0
      %887 = vmatprep.subr.mxu0 0.0
      %888 = vmatpush1.msra.mxu0 0.0
      %889 = vmatprep.subr.mxu0 0.0
      %890 = vmatpush1.msra.mxu0 0.0
      %891 = vmatprep.subr.mxu0 0.0
      %892 = vmatpush1.msra.mxu0 0.0
      %893 = vmatprep.subr.mxu0 0.0
      %894 = vmatpush1.msra.mxu0 0.0
      %895 = vmatprep.subr.mxu0 0.0
      %896 = vmatpush1.msra.mxu0 0.0
      %897 = vmatprep.subr.mxu0 0.0
      %898 = vmatpush1.msra.mxu0 0.0
      %899 = vmatprep.subr.mxu0 0.0
      %900 = vmatpush1.msra.mxu0 0.0
      %901 = vmatprep.subr.mxu0 0.0
      %902 = vmatpush1.msra.mxu0 0.0
      %903 = vmatprep.mubr.f32.mxu0 0.0
      %904 = vmatmul.mubr.f32.gmra.mrb[0].mxu0 %v831
      %v905 = vpop.f32.mrb[0].mxu0
      %v906 = vadd.f32 0.0, %v905
      %v907 = vpop.f32.mrb[0].mxu0
      %v908 = vadd.f32 0.0, %v907
      %909 = vdwg.mxu0
      %910 = vmatprep.subr.mxu0 0.0
      %911 = vmatpush1.msra.mxu0 %v837
      %912 = vmatprep.subr.mxu0 0.0
      %913 = vmatpush1.msra.mxu0 0.0
      %914 = vmatprep.subr.mxu0 0.0
      %915 = vmatpush1.msra.mxu0 0.0
      %916 = vmatprep.subr.mxu0 0.0
      %917 = vmatpush1.msra.mxu0 0.0
      %918 = vmatprep.subr.mxu0 0.0
      %919 = vmatpush1.msra.mxu0 0.0
      %920 = vmatprep.subr.mxu0 0.0
      %921 = vmatpush1.msra.mxu0 0.0
      %922 = vmatprep.subr.mxu0 0.0
      %923 = vmatpush1.msra.mxu0 0.0
      %924 = vmatprep.subr.mxu0 0.0
      %925 = vmatpush1.msra.mxu0 0.0
      %926 = vmatprep.subr.mxu0 0.0
      %927 = vmatpush1.msra.mxu0 0.0
      %928 = vmatprep.subr.mxu0 0.0
      %929 = vmatpush1.msra.mxu0 0.0
      %930 = vmatprep.subr.mxu0 0.0
      %931 = vmatpush1.msra.mxu0 0.0
      %932 = vmatprep.subr.mxu0 0.0
      %933 = vmatpush1.msra.mxu0 0.0
      %934 = vmatprep.subr.mxu0 0.0
      %935 = vmatpush1.msra.mxu0 0.0
      %936 = vmatprep.subr.mxu0 0.0
      %937 = vmatpush1.msra.mxu0 0.0
      %938 = vmatprep.subr.mxu0 0.0
      %939 = vmatpush1.msra.mxu0 0.0
      %940 = vmatprep.subr.mxu0 0.0
      %941 = vmatpush1.msra.mxu0 0.0
      %942 = vmatprep.subr.mxu0 0.0
      %943 = vmatpush1.msra.mxu0 0.0
      %944 = vmatprep.subr.mxu0 0.0
      %945 = vmatpush1.msra.mxu0 0.0
      %946 = vmatprep.subr.mxu0 0.0
      %947 = vmatpush1.msra.mxu0 0.0
      %948 = vmatprep.subr.mxu0 0.0
      %949 = vmatpush1.msra.mxu0 0.0
      %950 = vmatprep.subr.mxu0 0.0
      %951 = vmatpush1.msra.mxu0 0.0
      %952 = vmatprep.subr.mxu0 0.0
      %953 = vmatpush1.msra.mxu0 0.0
      %954 = vmatprep.subr.mxu0 0.0
      %955 = vmatpush1.msra.mxu0 0.0
      %956 = vmatprep.subr.mxu0 0.0
      %957 = vmatpush1.msra.mxu0 0.0
      %958 = vmatprep.subr.mxu0 0.0
      %959 = vmatpush1.msra.mxu0 0.0
      %960 = vmatprep.subr.mxu0 0.0
      %961 = vmatpush1.msra.mxu0 0.0
      %962 = vmatprep.subr.mxu0 0.0
      %963 = vmatpush1.msra.mxu0 0.0
      %964 = vmatprep.subr.mxu0 0.0
      %965 = vmatpush1.msra.mxu0 0.0
      %966 = vmatprep.subr.mxu0 0.0
      %967 = vmatpush1.msra.mxu0 0.0
      %968 = vmatprep.subr.mxu0 0.0
      %969 = vmatpush1.msra.mxu0 0.0
      %970 = vmatprep.subr.mxu0 0.0
      %971 = vmatpush1.msra.mxu0 0.0
      %972 = vmatprep.subr.mxu0 0.0
      %973 = vmatpush1.msra.mxu0 0.0
      %974 = vmatprep.mubr.f32.mxu0 0.0
      %975 = vmatmul.mubr.f32.gmra.mrb[0].mxu0 %v831
      %v976 = vpop.f32.mrb[0].mxu0
      %v977 = vadd.f32 0.0, %v976
      %v978 = vpop.f32.mrb[0].mxu0
      %979 = vdwg.mxu0
      %v980 = vadd.f32 %v816, %v906
      %v981 = vadd.f32 %v817, %v908
      %v982 = vadd.f32 %v818, %v977
      %s983 = scalar_lea.vmem %s1, 40
      %v984 = vld [vmem:[%s983] sm:$0xff]
      %985 = vrot.lane.b32.xlu0 %v172, 108
      %v986 = vpop.permute.xlu0 %985
      %987 = vrot.lane.b32.xlu0 %v179, 108
      %v988 = vpop.permute.xlu0 %987
      %989 = vrot.lane.b32.xlu0 %v173, 108
      %v990 = vpop.permute.xlu0 %989
      %vm991 = vcmask 883712
      %v992 = vsel %vm991, %v986, %v988
      %v993 = vsel %vm991, %v988, %v990
      %v995 = vsel %vm189, %v984, 0
      %v997 = vsel %vm193, %v992, 0
      %v999 = vsel %vm193, %v993, 0
      %v1001 = vsel %vm193, %v990, 0
      %1003 = vmatprep.subr.mxu0 %v999
      %1004 = vmatpush1.msra.mxu0 %v997
      %1005 = vmatprep.subr.mxu0 0.0
      %1006 = vmatpush1.msra.mxu0 0.0
      %1007 = vmatprep.subr.mxu0 0.0
      %1008 = vmatpush1.msra.mxu0 0.0
      %1009 = vmatprep.subr.mxu0 0.0
      %1010 = vmatpush1.msra.mxu0 0.0
      %1011 = vmatprep.subr.mxu0 0.0
      %1012 = vmatpush1.msra.mxu0 0.0
      %1013 = vmatprep.subr.mxu0 0.0
      %1014 = vmatpush1.msra.mxu0 0.0
      %1015 = vmatprep.subr.mxu0 0.0
      %1016 = vmatpush1.msra.mxu0 0.0
      %1017 = vmatprep.subr.mxu0 0.0
      %1018 = vmatpush1.msra.mxu0 0.0
      %1019 = vmatprep.subr.mxu0 0.0
      %1020 = vmatpush1.msra.mxu0 0.0
      %1021 = vmatprep.subr.mxu0 0.0
      %1022 = vmatpush1.msra.mxu0 0.0
      %1023 = vmatprep.subr.mxu0 0.0
      %1024 = vmatpush1.msra.mxu0 0.0
      %1025 = vmatprep.subr.mxu0 0.0
      %1026 = vmatpush1.msra.mxu0 0.0
      %1027 = vmatprep.subr.mxu0 0.0
      %1028 = vmatpush1.msra.mxu0 0.0
      %1029 = vmatprep.subr.mxu0 0.0
      %1030 = vmatpush1.msra.mxu0 0.0
      %1031 = vmatprep.subr.mxu0 0.0
      %1032 = vmatpush1.msra.mxu0 0.0
      %1033 = vmatprep.subr.mxu0 0.0
      %1034 = vmatpush1.msra.mxu0 0.0
      %1035 = vmatprep.subr.mxu0 0.0
      %1036 = vmatpush1.msra.mxu0 0.0
      %1037 = vmatprep.subr.mxu0 0.0
      %1038 = vmatpush1.msra.mxu0 0.0
      %1039 = vmatprep.subr.mxu0 0.0
      %1040 = vmatpush1.msra.mxu0 0.0
      %1041 = vmatprep.subr.mxu0 0.0
      %1042 = vmatpush1.msra.mxu0 0.0
      %1043 = vmatprep.subr.mxu0 0.0
      %1044 = vmatpush1.msra.mxu0 0.0
      %1045 = vmatprep.subr.mxu0 0.0
      %1046 = vmatpush1.msra.mxu0 0.0
      %1047 = vmatprep.subr.mxu0 0.0
      %1048 = vmatpush1.msra.mxu0 0.0
      %1049 = vmatprep.subr.mxu0 0.0
      %1050 = vmatpush1.msra.mxu0 0.0
      %1051 = vmatprep.subr.mxu0 0.0
      %1052 = vmatpush1.msra.mxu0 0.0
      %1053 = vmatprep.subr.mxu0 0.0
      %1054 = vmatpush1.msra.mxu0 0.0
      %1055 = vmatprep.subr.mxu0 0.0
      %1056 = vmatpush1.msra.mxu0 0.0
      %1057 = vmatprep.subr.mxu0 0.0
      %1058 = vmatpush1.msra.mxu0 0.0
      %1059 = vmatprep.subr.mxu0 0.0
      %1060 = vmatpush1.msra.mxu0 0.0
      %1061 = vmatprep.subr.mxu0 0.0
      %1062 = vmatpush1.msra.mxu0 0.0
      %1063 = vmatprep.subr.mxu0 0.0
      %1064 = vmatpush1.msra.mxu0 0.0
      %1065 = vmatprep.subr.mxu0 0.0
      %1066 = vmatpush1.msra.mxu0 0.0
      %1067 = vmatprep.mubr.f32.mxu0 0.0
      %1068 = vmatmul.mubr.f32.gmra.mrb[0].mxu0 %v995
      %v1069 = vpop.f32.mrb[0].mxu0
      %v1070 = vadd.f32 0.0, %v1069
      %v1071 = vpop.f32.mrb[0].mxu0
      %v1072 = vadd.f32 0.0, %v1071
      %1073 = vdwg.mxu0
      %1074 = vmatprep.subr.mxu0 0.0
      %1075 = vmatpush1.msra.mxu0 %v1001
      %1076 = vmatprep.subr.mxu0 0.0
      %1077 = vmatpush1.msra.mxu0 0.0
      %1078 = vmatprep.subr.mxu0 0.0
      %1079 = vmatpush1.msra.mxu0 0.0
      %1080 = vmatprep.subr.mxu0 0.0
      %1081 = vmatpush1.msra.mxu0 0.0
      %1082 = vmatprep.subr.mxu0 0.0
      %1083 = vmatpush1.msra.mxu0 0.0
      %1084 = vmatprep.subr.mxu0 0.0
      %1085 = vmatpush1.msra.mxu0 0.0
      %1086 = vmatprep.subr.mxu0 0.0
      %1087 = vmatpush1.msra.mxu0 0.0
      %1088 = vmatprep.subr.mxu0 0.0
      %1089 = vmatpush1.msra.mxu0 0.0
      %1090 = vmatprep.subr.mxu0 0.0
      %1091 = vmatpush1.msra.mxu0 0.0
      %1092 = vmatprep.subr.mxu0 0.0
      %1093 = vmatpush1.msra.mxu0 0.0
      %1094 = vmatprep.subr.mxu0 0.0
      %1095 = vmatpush1.msra.mxu0 0.0
      %1096 = vmatprep.subr.mxu0 0.0
      %1097 = vmatpush1.msra.mxu0 0.0
      %1098 = vmatprep.subr.mxu0 0.0
      %1099 = vmatpush1.msra.mxu0 0.0
      %1100 = vmatprep.subr.mxu0 0.0
      %1101 = vmatpush1.msra.mxu0 0.0
      %1102 = vmatprep.subr.mxu0 0.0
      %1103 = vmatpush1.msra.mxu0 0.0
      %1104 = vmatprep.subr.mxu0 0.0
      %1105 = vmatpush1.msra.mxu0 0.0
      %1106 = vmatprep.subr.mxu0 0.0
      %1107 = vmatpush1.msra.mxu0 0.0
      %1108 = vmatprep.subr.mxu0 0.0
      %1109 = vmatpush1.msra.mxu0 0.0
      %1110 = vmatprep.subr.mxu0 0.0
      %1111 = vmatpush1.msra.mxu0 0.0
      %1112 = vmatprep.subr.mxu0 0.0
      %1113 = vmatpush1.msra.mxu0 0.0
      %1114 = vmatprep.subr.mxu0 0.0
      %1115 = vmatpush1.msra.mxu0 0.0
      %1116 = vmatprep.subr.mxu0 0.0
      %1117 = vmatpush1.msra.mxu0 0.0
      %1118 = vmatprep.subr.mxu0 0.0
      %1119 = vmatpush1.msra.mxu0 0.0
      %1120 = vmatprep.subr.mxu0 0.0
      %1121 = vmatpush1.msra.mxu0 0.0
      %1122 = vmatprep.subr.mxu0 0.0
      %1123 = vmatpush1.msra.mxu0 0.0
      %1124 = vmatprep.subr.mxu0 0.0
      %1125 = vmatpush1.msra.mxu0 0.0
      %1126 = vmatprep.subr.mxu0 0.0
      %1127 = vmatpush1.msra.mxu0 0.0
      %1128 = vmatprep.subr.mxu0 0.0
      %1129 = vmatpush1.msra.mxu0 0.0
      %1130 = vmatprep.subr.mxu0 0.0
      %1131 = vmatpush1.msra.mxu0 0.0
      %1132 = vmatprep.subr.mxu0 0.0
      %1133 = vmatpush1.msra.mxu0 0.0
      %1134 = vmatprep.subr.mxu0 0.0
      %1135 = vmatpush1.msra.mxu0 0.0
      %1136 = vmatprep.subr.mxu0 0.0
      %1137 = vmatpush1.msra.mxu0 0.0
      %1138 = vmatprep.mubr.f32.mxu0 0.0
      %1139 = vmatmul.mubr.f32.gmra.mrb[0].mxu0 %v995
      %v1140 = vpop.f32.mrb[0].mxu0
      %v1141 = vadd.f32 0.0, %v1140
      %v1142 = vpop.f32.mrb[0].mxu0
      %1143 = vdwg.mxu0
      %v1144 = vadd.f32 %v980, %v1070
      %v1145 = vadd.f32 %v981, %v1072
      %v1146 = vadd.f32 %v982, %v1141
      %s1147 = scalar_lea.vmem %s1, 48
      %v1148 = vld [vmem:[%s1147] sm:$0xff]
      %1149 = vrot.lane.b32.xlu0 %v172, 92
      %v1150 = vpop.permute.xlu0 %1149
      %1151 = vrot.lane.b32.xlu0 %v179, 92
      %v1152 = vpop.permute.xlu0 %1151
      %1153 = vrot.lane.b32.xlu0 %v173, 92
      %v1154 = vpop.permute.xlu0 %1153
      %vm1155 = vcmask 752640
      %v1156 = vsel %vm1155, %v1150, %v1152
      %v1157 = vsel %vm1155, %v1152, %v1154
      %v1159 = vsel %vm189, %v1148, 0
      %v1161 = vsel %vm193, %v1156, 0
      %v1163 = vsel %vm193, %v1157, 0
      %v1165 = vsel %vm193, %v1154, 0
      %1167 = vmatprep.subr.mxu0 %v1163
      %1168 = vmatpush1.msra.mxu0 %v1161
      %1169 = vmatprep.subr.mxu0 0.0
      %1170 = vmatpush1.msra.mxu0 0.0
      %1171 = vmatprep.subr.mxu0 0.0
      %1172 = vmatpush1.msra.mxu0 0.0
      %1173 = vmatprep.subr.mxu0 0.0
      %1174 = vmatpush1.msra.mxu0 0.0
      %1175 = vmatprep.subr.mxu0 0.0
      %1176 = vmatpush1.msra.mxu0 0.0
      %1177 = vmatprep.subr.mxu0 0.0
      %1178 = vmatpush1.msra.mxu0 0.0
      %1179 = vmatprep.subr.mxu0 0.0
      %1180 = vmatpush1.msra.mxu0 0.0
      %1181 = vmatprep.subr.mxu0 0.0
      %1182 = vmatpush1.msra.mxu0 0.0
      %1183 = vmatprep.subr.mxu0 0.0
      %1184 = vmatpush1.msra.mxu0 0.0
      %1185 = vmatprep.subr.mxu0 0.0
      %1186 = vmatpush1.msra.mxu0 0.0
      %1187 = vmatprep.subr.mxu0 0.0
      %1188 = vmatpush1.msra.mxu0 0.0
      %1189 = vmatprep.subr.mxu0 0.0
      %1190 = vmatpush1.msra.mxu0 0.0
      %1191 = vmatprep.subr.mxu0 0.0
      %1192 = vmatpush1.msra.mxu0 0.0
      %1193 = vmatprep.subr.mxu0 0.0
      %1194 = vmatpush1.msra.mxu0 0.0
      %1195 = vmatprep.subr.mxu0 0.0
      %1196 = vmatpush1.msra.mxu0 0.0
      %1197 = vmatprep.subr.mxu0 0.0
      %1198 = vmatpush1.msra.mxu0 0.0
      %1199 = vmatprep.subr.mxu0 0.0
      %1200 = vmatpush1.msra.mxu0 0.0
      %1201 = vmatprep.subr.mxu0 0.0
      %1202 = vmatpush1.msra.mxu0 0.0
      %1203 = vmatprep.subr.mxu0 0.0
      %1204 = vmatpush1.msra.mxu0 0.0
      %1205 = vmatprep.subr.mxu0 0.0
      %1206 = vmatpush1.msra.mxu0 0.0
      %1207 = vmatprep.subr.mxu0 0.0
      %1208 = vmatpush1.msra.mxu0 0.0
      %1209 = vmatprep.subr.mxu0 0.0
      %1210 = vmatpush1.msra.mxu0 0.0
      %1211 = vmatprep.subr.mxu0 0.0
      %1212 = vmatpush1.msra.mxu0 0.0
      %1213 = vmatprep.subr.mxu0 0.0
      %1214 = vmatpush1.msra.mxu0 0.0
      %1215 = vmatprep.subr.mxu0 0.0
      %1216 = vmatpush1.msra.mxu0 0.0
      %1217 = vmatprep.subr.mxu0 0.0
      %1218 = vmatpush1.msra.mxu0 0.0
      %1219 = vmatprep.subr.mxu0 0.0
      %1220 = vmatpush1.msra.mxu0 0.0
      %1221 = vmatprep.subr.mxu0 0.0
      %1222 = vmatpush1.msra.mxu0 0.0
      %1223 = vmatprep.subr.mxu0 0.0
      %1224 = vmatpush1.msra.mxu0 0.0
      %1225 = vmatprep.subr.mxu0 0.0
      %1226 = vmatpush1.msra.mxu0 0.0
      %1227 = vmatprep.subr.mxu0 0.0
      %1228 = vmatpush1.msra.mxu0 0.0
      %1229 = vmatprep.subr.mxu0 0.0
      %1230 = vmatpush1.msra.mxu0 0.0
      %1231 = vmatprep.mubr.f32.mxu0 0.0
      %1232 = vmatmul.mubr.f32.gmra.mrb[0].mxu0 %v1159
      %v1233 = vpop.f32.mrb[0].mxu0
      %v1234 = vadd.f32 0.0, %v1233
      %v1235 = vpop.f32.mrb[0].mxu0
      %v1236 = vadd.f32 0.0, %v1235
      %1237 = vdwg.mxu0
      %1238 = vmatprep.subr.mxu0 0.0
      %1239 = vmatpush1.msra.mxu0 %v1165
      %1240 = vmatprep.subr.mxu0 0.0
      %1241 = vmatpush1.msra.mxu0 0.0
      %1242 = vmatprep.subr.mxu0 0.0
      %1243 = vmatpush1.msra.mxu0 0.0
      %1244 = vmatprep.subr.mxu0 0.0
      %1245 = vmatpush1.msra.mxu0 0.0
      %1246 = vmatprep.subr.mxu0 0.0
      %1247 = vmatpush1.msra.mxu0 0.0
      %1248 = vmatprep.subr.mxu0 0.0
      %1249 = vmatpush1.msra.mxu0 0.0
      %1250 = vmatprep.subr.mxu0 0.0
      %1251 = vmatpush1.msra.mxu0 0.0
      %1252 = vmatprep.subr.mxu0 0.0
      %1253 = vmatpush1.msra.mxu0 0.0
      %1254 = vmatprep.subr.mxu0 0.0
      %1255 = vmatpush1.msra.mxu0 0.0
      %1256 = vmatprep.subr.mxu0 0.0
      %1257 = vmatpush1.msra.mxu0 0.0
      %1258 = vmatprep.subr.mxu0 0.0
      %1259 = vmatpush1.msra.mxu0 0.0
      %1260 = vmatprep.subr.mxu0 0.0
      %1261 = vmatpush1.msra.mxu0 0.0
      %1262 = vmatprep.subr.mxu0 0.0
      %1263 = vmatpush1.msra.mxu0 0.0
      %1264 = vmatprep.subr.mxu0 0.0
      %1265 = vmatpush1.msra.mxu0 0.0
      %1266 = vmatprep.subr.mxu0 0.0
      %1267 = vmatpush1.msra.mxu0 0.0
      %1268 = vmatprep.subr.mxu0 0.0
      %1269 = vmatpush1.msra.mxu0 0.0
      %1270 = vmatprep.subr.mxu0 0.0
      %1271 = vmatpush1.msra.mxu0 0.0
      %1272 = vmatprep.subr.mxu0 0.0
      %1273 = vmatpush1.msra.mxu0 0.0
      %1274 = vmatprep.subr.mxu0 0.0
      %1275 = vmatpush1.msra.mxu0 0.0
      %1276 = vmatprep.subr.mxu0 0.0
      %1277 = vmatpush1.msra.mxu0 0.0
      %1278 = vmatprep.subr.mxu0 0.0
      %1279 = vmatpush1.msra.mxu0 0.0
      %1280 = vmatprep.subr.mxu0 0.0
      %1281 = vmatpush1.msra.mxu0 0.0
      %1282 = vmatprep.subr.mxu0 0.0
      %1283 = vmatpush1.msra.mxu0 0.0
      %1284 = vmatprep.subr.mxu0 0.0
      %1285 = vmatpush1.msra.mxu0 0.0
      %1286 = vmatprep.subr.mxu0 0.0
      %1287 = vmatpush1.msra.mxu0 0.0
      %1288 = vmatprep.subr.mxu0 0.0
      %1289 = vmatpush1.msra.mxu0 0.0
      %1290 = vmatprep.subr.mxu0 0.0
      %1291 = vmatpush1.msra.mxu0 0.0
      %1292 = vmatprep.subr.mxu0 0.0
      %1293 = vmatpush1.msra.mxu0 0.0
      %1294 = vmatprep.subr.mxu0 0.0
      %1295 = vmatpush1.msra.mxu0 0.0
      %1296 = vmatprep.subr.mxu0 0.0
      %1297 = vmatpush1.msra.mxu0 0.0
      %1298 = vmatprep.subr.mxu0 0.0
      %1299 = vmatpush1.msra.mxu0 0.0
      %1300 = vmatprep.subr.mxu0 0.0
      %1301 = vmatpush1.msra.mxu0 0.0
      %1302 = vmatprep.mubr.f32.mxu0 0.0
      %1303 = vmatmul.mubr.f32.gmra.mrb[0].mxu0 %v1159
      %v1304 = vpop.f32.mrb[0].mxu0
      %v1305 = vadd.f32 0.0, %v1304
      %v1306 = vpop.f32.mrb[0].mxu0
      %1307 = vdwg.mxu0
      %v1308 = vadd.f32 %v1144, %v1234
      %v1309 = vadd.f32 %v1145, %v1236
      %v1310 = vadd.f32 %v1146, %v1305
      %s1311 = scalar_lea.vmem %s1, 56
      %v1312 = vld [vmem:[%s1311] sm:$0xff]
      %1313 = vrot.lane.b32.xlu0 %v172, 91
      %v1314 = vpop.permute.xlu0 %1313
      %1315 = vrot.lane.b32.xlu0 %v179, 91
      %v1316 = vpop.permute.xlu0 %1315
      %1317 = vrot.lane.b32.xlu0 %v173, 91
      %v1318 = vpop.permute.xlu0 %1317
      %vm1319 = vcmask 744448
      %v1320 = vsel %vm1319, %v1314, %v1316
      %v1321 = vsel %vm1319, %v1316, %v1318
      %v1323 = vsel %vm189, %v1312, 0
      %v1325 = vsel %vm193, %v1320, 0
      %v1327 = vsel %vm193, %v1321, 0
      %v1329 = vsel %vm193, %v1318, 0
      %1331 = vmatprep.subr.mxu0 %v1327
      %1332 = vmatpush1.msra.mxu0 %v1325
      %1333 = vmatprep.subr.mxu0 0.0
      %1334 = vmatpush1.msra.mxu0 0.0
      %1335 = vmatprep.subr.mxu0 0.0
      %1336 = vmatpush1.msra.mxu0 0.0
      %1337 = vmatprep.subr.mxu0 0.0
      %1338 = vmatpush1.msra.mxu0 0.0
      %1339 = vmatprep.subr.mxu0 0.0
      %1340 = vmatpush1.msra.mxu0 0.0
      %1341 = vmatprep.subr.mxu0 0.0
      %1342 = vmatpush1.msra.mxu0 0.0
      %1343 = vmatprep.subr.mxu0 0.0
      %1344 = vmatpush1.msra.mxu0 0.0
      %1345 = vmatprep.subr.mxu0 0.0
      %1346 = vmatpush1.msra.mxu0 0.0
      %1347 = vmatprep.subr.mxu0 0.0
      %1348 = vmatpush1.msra.mxu0 0.0
      %1349 = vmatprep.subr.mxu0 0.0
      %1350 = vmatpush1.msra.mxu0 0.0
      %1351 = vmatprep.subr.mxu0 0.0
      %1352 = vmatpush1.msra.mxu0 0.0
      %1353 = vmatprep.subr.mxu0 0.0
      %1354 = vmatpush1.msra.mxu0 0.0
      %1355 = vmatprep.subr.mxu0 0.0
      %1356 = vmatpush1.msra.mxu0 0.0
      %1357 = vmatprep.subr.mxu0 0.0
      %1358 = vmatpush1.msra.mxu0 0.0
      %1359 = vmatprep.subr.mxu0 0.0
      %1360 = vmatpush1.msra.mxu0 0.0
      %1361 = vmatprep.subr.mxu0 0.0
      %1362 = vmatpush1.msra.mxu0 0.0
      %1363 = vmatprep.subr.mxu0 0.0
      %1364 = vmatpush1.msra.mxu0 0.0
      %1365 = vmatprep.subr.mxu0 0.0
      %1366 = vmatpush1.msra.mxu0 0.0
      %1367 = vmatprep.subr.mxu0 0.0
      %1368 = vmatpush1.msra.mxu0 0.0
      %1369 = vmatprep.subr.mxu0 0.0
      %1370 = vmatpush1.msra.mxu0 0.0
      %1371 = vmatprep.subr.mxu0 0.0
      %1372 = vmatpush1.msra.mxu0 0.0
      %1373 = vmatprep.subr.mxu0 0.0
      %1374 = vmatpush1.msra.mxu0 0.0
      %1375 = vmatprep.subr.mxu0 0.0
      %1376 = vmatpush1.msra.mxu0 0.0
      %1377 = vmatprep.subr.mxu0 0.0
      %1378 = vmatpush1.msra.mxu0 0.0
      %1379 = vmatprep.subr.mxu0 0.0
      %1380 = vmatpush1.msra.mxu0 0.0
      %1381 = vmatprep.subr.mxu0 0.0
      %1382 = vmatpush1.msra.mxu0 0.0
      %1383 = vmatprep.subr.mxu0 0.0
      %1384 = vmatpush1.msra.mxu0 0.0
      %1385 = vmatprep.subr.mxu0 0.0
      %1386 = vmatpush1.msra.mxu0 0.0
      %1387 = vmatprep.subr.mxu0 0.0
      %1388 = vmatpush1.msra.mxu0 0.0
      %1389 = vmatprep.subr.mxu0 0.0
      %1390 = vmatpush1.msra.mxu0 0.0
      %1391 = vmatprep.subr.mxu0 0.0
      %1392 = vmatpush1.msra.mxu0 0.0
      %1393 = vmatprep.subr.mxu0 0.0
      %1394 = vmatpush1.msra.mxu0 0.0
      %1395 = vmatprep.mubr.f32.mxu0 0.0
      %1396 = vmatmul.mubr.f32.gmra.mrb[0].mxu0 %v1323
      %v1397 = vpop.f32.mrb[0].mxu0
      %v1398 = vadd.f32 0.0, %v1397
      %v1399 = vpop.f32.mrb[0].mxu0
      %v1400 = vadd.f32 0.0, %v1399
      %1401 = vdwg.mxu0
      %1402 = vmatprep.subr.mxu0 0.0
      %1403 = vmatpush1.msra.mxu0 %v1329
      %1404 = vmatprep.subr.mxu0 0.0
      %1405 = vmatpush1.msra.mxu0 0.0
      %1406 = vmatprep.subr.mxu0 0.0
      %1407 = vmatpush1.msra.mxu0 0.0
      %1408 = vmatprep.subr.mxu0 0.0
      %1409 = vmatpush1.msra.mxu0 0.0
      %1410 = vmatprep.subr.mxu0 0.0
      %1411 = vmatpush1.msra.mxu0 0.0
      %1412 = vmatprep.subr.mxu0 0.0
      %1413 = vmatpush1.msra.mxu0 0.0
      %1414 = vmatprep.subr.mxu0 0.0
      %1415 = vmatpush1.msra.mxu0 0.0
      %1416 = vmatprep.subr.mxu0 0.0
      %1417 = vmatpush1.msra.mxu0 0.0
      %1418 = vmatprep.subr.mxu0 0.0
      %1419 = vmatpush1.msra.mxu0 0.0
      %1420 = vmatprep.subr.mxu0 0.0
      %1421 = vmatpush1.msra.mxu0 0.0
      %1422 = vmatprep.subr.mxu0 0.0
      %1423 = vmatpush1.msra.mxu0 0.0
      %1424 = vmatprep.subr.mxu0 0.0
      %1425 = vmatpush1.msra.mxu0 0.0
      %1426 = vmatprep.subr.mxu0 0.0
      %1427 = vmatpush1.msra.mxu0 0.0
      %1428 = vmatprep.subr.mxu0 0.0
      %1429 = vmatpush1.msra.mxu0 0.0
      %1430 = vmatprep.subr.mxu0 0.0
      %1431 = vmatpush1.msra.mxu0 0.0
      %1432 = vmatprep.subr.mxu0 0.0
      %1433 = vmatpush1.msra.mxu0 0.0
      %1434 = vmatprep.subr.mxu0 0.0
      %1435 = vmatpush1.msra.mxu0 0.0
      %1436 = vmatprep.subr.mxu0 0.0
      %1437 = vmatpush1.msra.mxu0 0.0
      %1438 = vmatprep.subr.mxu0 0.0
      %1439 = vmatpush1.msra.mxu0 0.0
      %1440 = vmatprep.subr.mxu0 0.0
      %1441 = vmatpush1.msra.mxu0 0.0
      %1442 = vmatprep.subr.mxu0 0.0
      %1443 = vmatpush1.msra.mxu0 0.0
      %1444 = vmatprep.subr.mxu0 0.0
      %1445 = vmatpush1.msra.mxu0 0.0
      %1446 = vmatprep.subr.mxu0 0.0
      %1447 = vmatpush1.msra.mxu0 0.0
      %1448 = vmatprep.subr.mxu0 0.0
      %1449 = vmatpush1.msra.mxu0 0.0
      %1450 = vmatprep.subr.mxu0 0.0
      %1451 = vmatpush1.msra.mxu0 0.0
      %1452 = vmatprep.subr.mxu0 0.0
      %1453 = vmatpush1.msra.mxu0 0.0
      %1454 = vmatprep.subr.mxu0 0.0
      %1455 = vmatpush1.msra.mxu0 0.0
      %1456 = vmatprep.subr.mxu0 0.0
      %1457 = vmatpush1.msra.mxu0 0.0
      %1458 = vmatprep.subr.mxu0 0.0
      %1459 = vmatpush1.msra.mxu0 0.0
      %1460 = vmatprep.subr.mxu0 0.0
      %1461 = vmatpush1.msra.mxu0 0.0
      %1462 = vmatprep.subr.mxu0 0.0
      %1463 = vmatpush1.msra.mxu0 0.0
      %1464 = vmatprep.subr.mxu0 0.0
      %1465 = vmatpush1.msra.mxu0 0.0
      %1466 = vmatprep.mubr.f32.mxu0 0.0
      %1467 = vmatmul.mubr.f32.gmra.mrb[0].mxu0 %v1323
      %v1468 = vpop.f32.mrb[0].mxu0
      %v1469 = vadd.f32 0.0, %v1468
      %v1470 = vpop.f32.mrb[0].mxu0
      %1471 = vdwg.mxu0
      %v1472 = vadd.f32 %v1308, %v1398
      %v1473 = vadd.f32 %v1309, %v1400
      %v1474 = vadd.f32 %v1310, %v1469
      %s1475 = scalar_lea.vmem %s1, 64
      %v1476 = vld [vmem:[%s1475] sm:$0xff]
      %1477 = vrot.lane.b32.xlu0 %v172, 90
      %v1478 = vpop.permute.xlu0 %1477
      %1479 = vrot.lane.b32.xlu0 %v179, 90
      %v1480 = vpop.permute.xlu0 %1479
      %1481 = vrot.lane.b32.xlu0 %v173, 90
      %v1482 = vpop.permute.xlu0 %1481
      %vm1483 = vcmask 736256
      %v1484 = vsel %vm1483, %v1478, %v1480
      %v1485 = vsel %vm1483, %v1480, %v1482
      %v1487 = vsel %vm189, %v1476, 0
      %v1489 = vsel %vm193, %v1484, 0
      %v1491 = vsel %vm193, %v1485, 0
      %v1493 = vsel %vm193, %v1482, 0
      %1495 = vmatprep.subr.mxu0 %v1491
      %1496 = vmatpush1.msra.mxu0 %v1489
      %1497 = vmatprep.subr.mxu0 0.0
      %1498 = vmatpush1.msra.mxu0 0.0
      %1499 = vmatprep.subr.mxu0 0.0
      %1500 = vmatpush1.msra.mxu0 0.0
      %1501 = vmatprep.subr.mxu0 0.0
      %1502 = vmatpush1.msra.mxu0 0.0
      %1503 = vmatprep.subr.mxu0 0.0
      %1504 = vmatpush1.msra.mxu0 0.0
      %1505 = vmatprep.subr.mxu0 0.0
      %1506 = vmatpush1.msra.mxu0 0.0
      %1507 = vmatprep.subr.mxu0 0.0
      %1508 = vmatpush1.msra.mxu0 0.0
      %1509 = vmatprep.subr.mxu0 0.0
      %1510 = vmatpush1.msra.mxu0 0.0
      %1511 = vmatprep.subr.mxu0 0.0
      %1512 = vmatpush1.msra.mxu0 0.0
      %1513 = vmatprep.subr.mxu0 0.0
      %1514 = vmatpush1.msra.mxu0 0.0
      %1515 = vmatprep.subr.mxu0 0.0
      %1516 = vmatpush1.msra.mxu0 0.0
      %1517 = vmatprep.subr.mxu0 0.0
      %1518 = vmatpush1.msra.mxu0 0.0
      %1519 = vmatprep.subr.mxu0 0.0
      %1520 = vmatpush1.msra.mxu0 0.0
      %1521 = vmatprep.subr.mxu0 0.0
      %1522 = vmatpush1.msra.mxu0 0.0
      %1523 = vmatprep.subr.mxu0 0.0
      %1524 = vmatpush1.msra.mxu0 0.0
      %1525 = vmatprep.subr.mxu0 0.0
      %1526 = vmatpush1.msra.mxu0 0.0
      %1527 = vmatprep.subr.mxu0 0.0
      %1528 = vmatpush1.msra.mxu0 0.0
      %1529 = vmatprep.subr.mxu0 0.0
      %1530 = vmatpush1.msra.mxu0 0.0
      %1531 = vmatprep.subr.mxu0 0.0
      %1532 = vmatpush1.msra.mxu0 0.0
      %1533 = vmatprep.subr.mxu0 0.0
      %1534 = vmatpush1.msra.mxu0 0.0
      %1535 = vmatprep.subr.mxu0 0.0
      %1536 = vmatpush1.msra.mxu0 0.0
      %1537 = vmatprep.subr.mxu0 0.0
      %1538 = vmatpush1.msra.mxu0 0.0
      %1539 = vmatprep.subr.mxu0 0.0
      %1540 = vmatpush1.msra.mxu0 0.0
      %1541 = vmatprep.subr.mxu0 0.0
      %1542 = vmatpush1.msra.mxu0 0.0
      %1543 = vmatprep.subr.mxu0 0.0
      %1544 = vmatpush1.msra.mxu0 0.0
      %1545 = vmatprep.subr.mxu0 0.0
      %1546 = vmatpush1.msra.mxu0 0.0
      %1547 = vmatprep.subr.mxu0 0.0
      %1548 = vmatpush1.msra.mxu0 0.0
      %1549 = vmatprep.subr.mxu0 0.0
      %1550 = vmatpush1.msra.mxu0 0.0
      %1551 = vmatprep.subr.mxu0 0.0
      %1552 = vmatpush1.msra.mxu0 0.0
      %1553 = vmatprep.subr.mxu0 0.0
      %1554 = vmatpush1.msra.mxu0 0.0
      %1555 = vmatprep.subr.mxu0 0.0
      %1556 = vmatpush1.msra.mxu0 0.0
      %1557 = vmatprep.subr.mxu0 0.0
      %1558 = vmatpush1.msra.mxu0 0.0
      %1559 = vmatprep.mubr.f32.mxu0 0.0
      %1560 = vmatmul.mubr.f32.gmra.mrb[0].mxu0 %v1487
      %v1561 = vpop.f32.mrb[0].mxu0
      %v1562 = vadd.f32 0.0, %v1561
      %v1563 = vpop.f32.mrb[0].mxu0
      %v1564 = vadd.f32 0.0, %v1563
      %1565 = vdwg.mxu0
      %1566 = vmatprep.subr.mxu0 0.0
      %1567 = vmatpush1.msra.mxu0 %v1493
      %1568 = vmatprep.subr.mxu0 0.0
      %1569 = vmatpush1.msra.mxu0 0.0
      %1570 = vmatprep.subr.mxu0 0.0
      %1571 = vmatpush1.msra.mxu0 0.0
      %1572 = vmatprep.subr.mxu0 0.0
      %1573 = vmatpush1.msra.mxu0 0.0
      %1574 = vmatprep.subr.mxu0 0.0
      %1575 = vmatpush1.msra.mxu0 0.0
      %1576 = vmatprep.subr.mxu0 0.0
      %1577 = vmatpush1.msra.mxu0 0.0
      %1578 = vmatprep.subr.mxu0 0.0
      %1579 = vmatpush1.msra.mxu0 0.0
      %1580 = vmatprep.subr.mxu0 0.0
      %1581 = vmatpush1.msra.mxu0 0.0
      %1582 = vmatprep.subr.mxu0 0.0
      %1583 = vmatpush1.msra.mxu0 0.0
      %1584 = vmatprep.subr.mxu0 0.0
      %1585 = vmatpush1.msra.mxu0 0.0
      %1586 = vmatprep.subr.mxu0 0.0
      %1587 = vmatpush1.msra.mxu0 0.0
      %1588 = vmatprep.subr.mxu0 0.0
      %1589 = vmatpush1.msra.mxu0 0.0
      %1590 = vmatprep.subr.mxu0 0.0
      %1591 = vmatpush1.msra.mxu0 0.0
      %1592 = vmatprep.subr.mxu0 0.0
      %1593 = vmatpush1.msra.mxu0 0.0
      %1594 = vmatprep.subr.mxu0 0.0
      %1595 = vmatpush1.msra.mxu0 0.0
      %1596 = vmatprep.subr.mxu0 0.0
      %1597 = vmatpush1.msra.mxu0 0.0
      %1598 = vmatprep.subr.mxu0 0.0
      %1599 = vmatpush1.msra.mxu0 0.0
      %1600 = vmatprep.subr.mxu0 0.0
      %1601 = vmatpush1.msra.mxu0 0.0
      %1602 = vmatprep.subr.mxu0 0.0
      %1603 = vmatpush1.msra.mxu0 0.0
      %1604 = vmatprep.subr.mxu0 0.0
      %1605 = vmatpush1.msra.mxu0 0.0
      %1606 = vmatprep.subr.mxu0 0.0
      %1607 = vmatpush1.msra.mxu0 0.0
      %1608 = vmatprep.subr.mxu0 0.0
      %1609 = vmatpush1.msra.mxu0 0.0
      %1610 = vmatprep.subr.mxu0 0.0
      %1611 = vmatpush1.msra.mxu0 0.0
      %1612 = vmatprep.subr.mxu0 0.0
      %1613 = vmatpush1.msra.mxu0 0.0
      %1614 = vmatprep.subr.mxu0 0.0
      %1615 = vmatpush1.msra.mxu0 0.0
      %1616 = vmatprep.subr.mxu0 0.0
      %1617 = vmatpush1.msra.mxu0 0.0
      %1618 = vmatprep.subr.mxu0 0.0
      %1619 = vmatpush1.msra.mxu0 0.0
      %1620 = vmatprep.subr.mxu0 0.0
      %1621 = vmatpush1.msra.mxu0 0.0
      %1622 = vmatprep.subr.mxu0 0.0
      %1623 = vmatpush1.msra.mxu0 0.0
      %1624 = vmatprep.subr.mxu0 0.0
      %1625 = vmatpush1.msra.mxu0 0.0
      %1626 = vmatprep.subr.mxu0 0.0
      %1627 = vmatpush1.msra.mxu0 0.0
      %1628 = vmatprep.subr.mxu0 0.0
      %1629 = vmatpush1.msra.mxu0 0.0
      %1630 = vmatprep.mubr.f32.mxu0 0.0
      %1631 = vmatmul.mubr.f32.gmra.mrb[0].mxu0 %v1487
      %v1632 = vpop.f32.mrb[0].mxu0
      %v1633 = vadd.f32 0.0, %v1632
      %v1634 = vpop.f32.mrb[0].mxu0
      %1635 = vdwg.mxu0
      %v1636 = vadd.f32 %v1472, %v1562
      %v1637 = vadd.f32 %v1473, %v1564
      %v1638 = vadd.f32 %v1474, %v1633
      %1640 = vset.pattern.permute.xlu0 0
      %1641 = vperm.xlu0 %1640, %v171
      %v1642 = vpop.permute.xlu0 %1641
      %v1644 = vadd.f32 %v1636, %v1642
      %v1645 = vadd.f32 %v1637, %v1642
      %v1646 = vadd.f32 %v1638, %v1642
      %1647 = vst [vmem:[%s170] sm:$0xff] %v1644
      %1648 = vst [vmem:[%s170 + $0x8] sm:$0xff] %v1645
      %vm1649 = vcmask 556032
      %1650 = vst.msk [vmem:[%s170 + $0x10] sm:$0xff] %vm1649, %v1646
      %p1651 = scmp.lt.s32.totalorder %s14, 1
      %s1652 = scalar_select %p1651, %s14, 1
      %s1653 = smul.addr %s1652, 3
      %s1654 = smul.addr %s1653, 8
      %s1655 = scalar_lea.vmem %s3, %s1654
      // Predicated region
      $region33: #{self_ensemble_forward.1} parent=31 // pred_check
        %p1656 = pneg %p100
      $region34: #{self_ensemble_forward.1} parent=31 // pred_check_branch
        %1658 = sbr.rel (%p1656) target = $region36
      $region35: #{self_ensemble_forward.1} parent=31 // pred_region
        _
      $region36: #{self_ensemble_forward.1} parent=31 // pred_fallthru
        _
    $region32: #{self_ensemble_forward.1} parent=5 // pred_fallthru
      _
    %p1659 = scmp.le.s32.totalorder 2, %s9
    // Predicated region
    $region37: #{self_ensemble_forward.1} parent=5 // pred_check
      %p1660 = pneg %p1659
    $region38: #{self_ensemble_forward.1} parent=5 // pred_check_branch
      %1662 = sbr.rel (%p1660) target = $region40
    $region39: #{self_ensemble_forward.1} parent=5 // pred_region
      %s1663 = ssub.s32 %s9, 2
      // Predicated region
      $region41: #{self_ensemble_forward.1} parent=39 // pred_check
        %p1664 = pneg %p106
      $region42: #{self_ensemble_forward.1} parent=39 // pred_check_branch
        %1666 = sbr.rel (%p1664) target = $region44
      $region43: #{self_ensemble_forward.1} parent=39 // pred_region
        %p1667 = scmp.lt.s32.totalorder %s15, 1
        %s1668 = scalar_select %p1667, %s15, 1
        %s1669 = smul.addr %s1668, 3
        %s1670 = smul.addr %s1669, 8
        %s1671 = scalar_lea.vmem %s3, %s1670
      $region44: #{self_ensemble_forward.1} parent=39 // pred_fallthru
        _
    $region40: #{self_ensemble_forward.1} parent=5 // pred_fallthru
      _
  $region6: #{self_ensemble_forward.1} parent=0 // loop_footer
    %s13 = sadd.s32 1, %s9
  $region7: #{self_ensemble_forward.1} parent=0 // loop_footer_branch
    %8 = sbr.rel target = $region3
  $region8: #{self_ensemble_forward.1} parent=0 // loop_exit
    _

</llo_original>
